<compile_context>
chip_gen: v5e
topology: v5e:2x2
jax: 0.10.0
libtpu: 0.0.40
codegen_flags: <defaults>
</compile_context>

<pallas_src>
import functools

import jax
import jax.numpy as jnp
from jax import lax
from jax.experimental import pallas as pl
from jax.experimental.pallas import tpu as pltpu

BN_EPS = 1e-5       # nn.BatchNorm1d default eps
DIST_EPS = 1e-8     # matches 1.0 / (dists + 1e-08)
PAD_COORD = 1e9     # coordinate for padded xyz2 points -> never selected as NN
VMEM_LIMIT = 48 * 1024 * 1024   # < 64 MiB physical on v7x, safe on v5e/v6e


def _round_up(x, m):
    return (x + m - 1) // m * m


def _interp_layer0_kernel(use_mask, *refs):
    """Fused 3-NN interpolation + concat + first Conv1d(k=1), one (b, n) tile."""
    if use_mask:
        (xyz1_ref, xyz2t_ref, p2w_ref, p1_ref, w0a_ref, b0_ref, mask_ref,
         h_ref, stats_ref) = refs
    else:
        (xyz1_ref, xyz2t_ref, p2w_ref, p1_ref, w0a_ref, b0_ref,
         h_ref, stats_ref) = refs
        mask_ref = None

    a = xyz1_ref[0]          # [TN, 3]     point-major query coordinates
    bt = xyz2t_ref[0]        # [3, S_pad]  channel-major sampled coordinates
    tn = a.shape[0]
    s_pad = bt.shape[1]

    # Squared pairwise distances on the VPU (>= 0 by construction, unlike the
    # -2ab + a^2 + b^2 expansion the PyTorch code uses).
    d = (a[:, 0:1] - bt[0:1, :]) ** 2
    d = d + (a[:, 1:2] - bt[1:2, :]) ** 2
    d = d + (a[:, 2:3] - bt[2:3, :]) ** 2                        # [TN, S_pad]

    iota = lax.broadcasted_iota(jnp.int32, (tn, s_pad), 1)

    # 3 smallest distances per row (== dists.sort(-1)[..., :3]).  `sel` is
    # computed once per neighbor and reused for invalidation + accumulation;
    # normalization is a single broadcast multiply after the loop.
    rem = d
    w = jnp.zeros((tn, s_pad), jnp.float32)
    total = jnp.zeros((tn, 1), jnp.float32)
    for i in range(3):
        mn = jnp.min(rem, axis=-1, keepdims=True)                          # [TN,1]
        am = jnp.min(jnp.where(rem == mn, iota, s_pad), axis=-1, keepdims=True)
        sel = iota == am
        r = pl.reciprocal(mn + DIST_EPS, approx=True)                      # EUP
        total = total + r
        w = jnp.where(sel, r, w)            # unnormalized recip at selected lane
        if i < 2:
            rem = jnp.where(sel, jnp.float32(jnp.inf), rem)

    w = w * pl.reciprocal(total, approx=False)   # exact [TN,1] normalization

    # Interpolation + first-layer "interp part" as one MXU matmul with the
    # precomputed (points2 @ W0b.T), plus the skip-connection part.
    h = jnp.dot(w.astype(jnp.bfloat16), p2w_ref[0],
                preferred_element_type=jnp.float32)                        # [TN, C0]
    h = h + jnp.dot(p1_ref[0].astype(jnp.bfloat16), w0a_ref[...],
                    preferred_element_type=jnp.float32)
    h = h + b0_ref[...]

    h_ref[0] = h.astype(h_ref.dtype)        # bf16 slab to HBM

    # Per-tile BatchNorm partials (over valid rows only when padding exists).
    hm = h * mask_ref[0] if use_mask else h
    ssum = jnp.sum(hm, axis=0, keepdims=True)
    ssq = jnp.sum(hm * hm, axis=0, keepdims=True)
    stats_ref[0] = jnp.concatenate([ssum, ssq], axis=0)                    # [2, C0]


def _bn_relu_conv_kernel(use_mask, *refs):
    """BN (previous layer's global stats) + ReLU + next Conv1d(k=1), one row tile."""
    if use_mask:
        (h_ref, scale_ref, shift_ref, wt_ref, b_ref, mask_ref,
         out_ref, stats_ref) = refs
    else:
        (h_ref, scale_ref, shift_ref, wt_ref, b_ref,
         out_ref, stats_ref) = refs
        mask_ref = None

    y = jnp.maximum(
        h_ref[...].astype(jnp.float32) * scale_ref[...] + shift_ref[...], 0.0)
    h = jnp.dot(y.astype(jnp.bfloat16), wt_ref[...],
                preferred_element_type=jnp.float32) + b_ref[...]
    out_ref[...] = h.astype(out_ref.dtype)

    hm = h * mask_ref[...] if use_mask else h
    ssum = jnp.sum(hm, axis=0, keepdims=True)
    ssq = jnp.sum(hm * hm, axis=0, keepdims=True)
    stats_ref[0] = jnp.concatenate([ssum, ssq], axis=0)


def _bn_relu_kernel(h_ref, scale_ref, shift_ref, out_ref):
    """Final BN + ReLU, one row tile."""
    out_ref[...] = jnp.maximum(
        h_ref[...].astype(jnp.float32) * scale_ref[...] + shift_ref[...], 0.0)


def pointnet_feature_propagation(xyz1, xyz2, points1, points2, params):
    B, N, _ = xyz1.shape
    _, S, _ = xyz2.shape
    if S == 1:
        # TODO(synk): S == 1 branch (points2.repeat(1, N, 1)) not implemented;
        # only the S > 1 interpolation path is supported.
        raise NotImplementedError("S == 1 branch not implemented")

    f32, bf16 = jnp.float32, jnp.bfloat16

    # ---- tile sizes / padded extents --------------------------------------
    S_pad = _round_up(S, 128)                 # lane-dense [TN, S] distance tiles
    # Call-1 row tile; drop to 128 when S_pad is large so the [TN, S_pad] f32
    # temporaries stay inside v5e's small scoped-VMEM budget.
    tn_cap = 256 if S_pad < 1024 else 128
    TN = min(tn_cap, _round_up(N, 8))
    N_pad = _round_up(N, TN)
    NT = N_pad // TN
    R_pad = B * N_pad
    RT1 = B * NT                              # stats tiles of call 1
    # MLP-stage row tile: largest power-of-two multiple of TN (<= 1024) that
    # divides R_pad — amortizes per-step overhead of the HBM-bound layers.
    TM = TN
    while TM * 2 <= 1024 and R_pad % (TM * 2) == 0:
        TM *= 2
    RTM = R_pad // TM

    use_mask = N_pad != N                     # mask only needed with row padding
    count = float(B * N)                      # BN statistics over real rows only

    # ---- wrapper-side padding / layout plumbing (cheap XLA ops) -----------
    xyz1_p = jnp.pad(xyz1.astype(f32), ((0, 0), (0, N_pad - N), (0, 0)))
    xyz2_t = jnp.pad(xyz2.astype(f32), ((0, 0), (0, S_pad - S), (0, 0)),
                     constant_values=PAD_COORD).transpose(0, 2, 1)   # [B,3,S_pad]
    p2_pad = jnp.pad(points2.astype(f32), ((0, 0), (0, S_pad - S), (0, 0)))

    W0, b0, g0, beta0 = params[0]
    C0 = W0.shape[0]
    if points1 is not None:
        D1 = points1.shape[-1]
        W0a, W0b = W0[:, :D1], W0[:, D1:]
        p1_pad = jnp.pad(points1.astype(f32), ((0, 0), (0, N_pad - N), (0, 0)))
    else:
        D1 = 1
        W0a = jnp.zeros((C0, 1), f32)
        W0b = W0
        p1_pad = jnp.zeros((B, N_pad, 1), f32)

    # Fold the first conv into the interpolation: precompute points2 @ W0b.T
    p2w = jnp.einsum("bsd,cd->bsc", p2_pad, W0b.astype(f32)).astype(bf16)
    w0a_t = W0a.T.astype(bf16)                                     # [D1, C0]
    b0_row = b0.reshape(1, C0).astype(f32)

    if use_mask:
        row_valid = (jnp.arange(N_pad) < N).astype(f32)
        mask3d = jnp.broadcast_to(row_valid[None, :, None], (B, N_pad, 1))
        mask2d = mask3d.reshape(R_pad, 1)

    # ---- call 1: interpolation + concat + first Conv1d --------------------
    in_specs = [
        pl.BlockSpec((1, TN, 3), lambda b, n: (b, n, 0)),
        pl.BlockSpec((1, 3, S_pad), lambda b, n: (b, 0, 0)),
        pl.BlockSpec((1, S_pad, C0), lambda b, n: (b, 0, 0)),
        pl.BlockSpec((1, TN, D1), lambda b, n: (b, n, 0)),
        pl.BlockSpec((D1, C0), lambda b, n: (0, 0)),
        pl.BlockSpec((1, C0), lambda b, n: (0, 0)),
    ]
    args = [xyz1_p, xyz2_t, p2w, p1_pad, w0a_t, b0_row]
    if use_mask:
        in_specs.append(pl.BlockSpec((1, TN, 1), lambda b, n: (b, n, 0)))
        args.append(mask3d)

    h, stats = pl.pallas_call(
        functools.partial(_interp_layer0_kernel, use_mask),
        out_shape=(jax.ShapeDtypeStruct((B, N_pad, C0), bf16),
                   jax.ShapeDtypeStruct((RT1, 2, C0), f32)),
        grid_spec=pl.GridSpec(
            grid=(B, NT),
            in_specs=in_specs,
            out_specs=(
                pl.BlockSpec((1, TN, C0), lambda b, n: (b, n, 0)),
                pl.BlockSpec((1, 2, C0), lambda b, n: (b * NT + n, 0, 0)),
            ),
        ),
        compiler_params=pltpu.CompilerParams(
            dimension_semantics=("parallel", "parallel"),
            vmem_limit_bytes=VMEM_LIMIT),
    )(*args)

    h = h.reshape(R_pad, C0)

    def _bn_coeffs(stats, gamma, beta):
        # Global (training-mode, biased) BN stats from per-tile partials,
        # folded into per-channel scale/shift so the kernels do one FMA.
        ssum = jnp.sum(stats[:, 0, :], axis=0)
        ssq = jnp.sum(stats[:, 1, :], axis=0)
        mean = ssum / count
        var = jnp.maximum(ssq / count - mean * mean, 0.0)   # single pass, f32
        scale = gamma.astype(f32) / jnp.sqrt(var + BN_EPS)
        shift = beta.astype(f32) - mean * scale
        return scale.reshape(1, -1), shift.reshape(1, -1)

    scale, shift = _bn_coeffs(stats, g0, beta0)

    # ---- calls 2..L: BN + ReLU + Conv1d fused per layer --------------------
    for (W, bb, g, beta) in params[1:]:
        cout, cin = W.shape
        in_specs = [
            pl.BlockSpec((TM, cin), lambda t: (t, 0)),
            pl.BlockSpec((1, cin), lambda t: (0, 0)),
            pl.BlockSpec((1, cin), lambda t: (0, 0)),
            pl.BlockSpec((cin, cout), lambda t: (0, 0)),
            pl.BlockSpec((1, cout), lambda t: (0, 0)),
        ]
        args = [h, scale, shift, W.T.astype(bf16),
                bb.reshape(1, cout).astype(f32)]
        if use_mask:
            in_specs.append(pl.BlockSpec((TM, 1), lambda t: (t, 0)))
            args.append(mask2d)
        h, stats = pl.pallas_call(
            functools.partial(_bn_relu_conv_kernel, use_mask),
            out_shape=(jax.ShapeDtypeStruct((R_pad, cout), bf16),
                       jax.ShapeDtypeStruct((RTM, 2, cout), f32)),
            grid_spec=pl.GridSpec(
                grid=(RTM,),
                in_specs=in_specs,
                out_specs=(
                    pl.BlockSpec((TM, cout), lambda t: (t, 0)),
                    pl.BlockSpec((1, 2, cout), lambda t: (t, 0, 0)),
                ),
            ),
            compiler_params=pltpu.CompilerParams(
                dimension_semantics=("parallel",),
                vmem_limit_bytes=VMEM_LIMIT),
        )(*args)
        scale, shift = _bn_coeffs(stats, g, beta)

    # ---- final call: BN + ReLU of the last layer ---------------------------
    c_last = params[-1][0].shape[0]
    y = pl.pallas_call(
        _bn_relu_kernel,
        out_shape=jax.ShapeDtypeStruct((R_pad, c_last), f32),
        grid_spec=pl.GridSpec(
            grid=(RTM,),
            in_specs=[
                pl.BlockSpec((TM, c_last), lambda t: (t, 0)),
                pl.BlockSpec((1, c_last), lambda t: (0, 0)),
                pl.BlockSpec((1, c_last), lambda t: (0, 0)),
            ],
            out_specs=pl.BlockSpec((TM, c_last), lambda t: (t, 0)),
        ),
        compiler_params=pltpu.CompilerParams(
            dimension_semantics=("parallel",),
            vmem_limit_bytes=VMEM_LIMIT),
    )(h, scale, shift)

    # TODO(synk): final [B, N, C] -> [B, C, N] permute left to XLA to avoid
    # in-kernel transposes of small / non-(8,128)-aligned channel tiles.
    return y.reshape(B, N_pad, c_last)[:, :N, :].transpose(0, 2, 1)


def _reference(xyz1, xyz2, points1, points2, params):
    """Pure-JAX f32 reference with the PyTorch module's semantics."""
    B, N, _ = xyz1.shape
    d = (jnp.sum(xyz1 ** 2, -1)[:, :, None]
         - 2.0 * jnp.einsum("bnc,bsc->bns", xyz1, xyz2)
         + jnp.sum(xyz2 ** 2, -1)[:, None, :])
    neg_d, idx = lax.top_k(-d, 3)
    dists = -neg_d
    recip = 1.0 / (dists + DIST_EPS)
    w = recip / jnp.sum(recip, -1, keepdims=True)
    gathered = jax.vmap(lambda p2, i: p2[i])(points2, idx)      # [B, N, 3, D2]
    interp = jnp.sum(gathered * w[..., None], axis=2)
    new_points = interp if points1 is None else jnp.concatenate([points1, interp], -1)
    x = new_points.reshape(B * N, -1)
    for (wc, bc, g, beta) in params:
        h = x @ wc.T + bc
        mean = jnp.mean(h, axis=0, keepdims=True)
        var = jnp.mean((h - mean) ** 2, axis=0, keepdims=True)
        x = jnp.maximum(g * (h - mean) / jnp.sqrt(var + BN_EPS) + beta, 0.0)
    return x.reshape(B, N, -1).transpose(0, 2, 1)


if __name__ == "__main__":
    key = jax.random.PRNGKey(0)
    B, N, S, C, D1, D2 = 2, 64, 16, 3, 8, 8
    in_channel = D1 + D2          # points1 feats + points2 feats after concat
    mlp_channels = [32, 16]

    k = jax.random.split(key, 5)
    xyz1 = jax.random.normal(k[0], (B, N, C), jnp.float32)
    xyz2 = jax.random.normal(k[1], (B, S, C), jnp.float32)
    points1 = jax.random.normal(k[2], (B, N, D1), jnp.float32)
    points2 = jax.random.normal(k[3], (B, S, D2), jnp.float32)

    # deterministic parameter init (Conv1d weight [out,in,1] squeezed, Conv bias,
    # BatchNorm weight/bias)
    params = []
    last = in_channel
    pk = k[4]
    for cout in mlp_channels:
        pk, kw, kb, kg, kbeta = jax.random.split(pk, 5)
        w = 0.2 * jax.random.normal(kw, (cout, last), jnp.float32)
        b = 0.1 * jax.random.normal(kb, (cout,), jnp.float32)
        g = 1.0 + 0.1 * jax.random.normal(kg, (cout,), jnp.float32)
        beta = 0.1 * jax.random.normal(kbeta, (cout,), jnp.float32)
        params.append((w, b, g, beta))
        last = cout

    fp = jax.jit(pointnet_feature_propagation)
    out = fp(xyz1, xyz2, points1, points2, params)
    out = jax.block_until_ready(out)

    assert out.shape == (B, mlp_channels[-1], N), out.shape
    ref = _reference(xyz1, xyz2, points1, points2, params)
    max_err = float(jnp.max(jnp.abs(out - ref)))
    if max_err > 5e-2:
        raise AssertionError(f"mismatch vs reference, max abs err = {max_err}")

    print("KERNEL_OK")
</pallas_src>

<mosaic_0001>
module attributes {stable_mosaic.version = 11 : i64} {
  func.func @_bn_relu_kernel(%arg0: i32, %arg1: memref<128x16xbf16, #tpu.memory_space<vmem>>, %arg2: memref<1x16xf32, #tpu.memory_space<vmem>>, %arg3: memref<1x16xf32, #tpu.memory_space<vmem>>, %arg4: memref<128x16xf32, #tpu.memory_space<vmem>>) attributes {dimension_semantics = [#tpu.dimension_semantics<parallel>], iteration_bounds = array<i64: 1>, scalar_prefetch = 0 : i64, scratch_operands = 0 : i64, tpu.core_type = #tpu.core_type<tc>, window_params = [{transform_indices = @transform_0, window_bounds = array<i64: 128, 16>}, {pipeline_mode = #tpu.pipeline_mode<synchronous>, transform_indices = @transform_1, window_bounds = array<i64: 1, 16>}, {pipeline_mode = #tpu.pipeline_mode<synchronous>, transform_indices = @transform_2, window_bounds = array<i64: 1, 16>}, {transform_indices = @transform_3, window_bounds = array<i64: 128, 16>}]} {
    %c0 = arith.constant 0 : index
    %c0_0 = arith.constant 0 : index
    %0 = vector.load %arg1[%c0, %c0_0] : memref<128x16xbf16, #tpu.memory_space<vmem>>, vector<128x16xbf16>
    %1 = arith.extf %0 : vector<128x16xbf16> to vector<128x16xf32>
    %c0_1 = arith.constant 0 : index
    %c0_2 = arith.constant 0 : index
    %2 = vector.load %arg2[%c0_1, %c0_2] : memref<1x16xf32, #tpu.memory_space<vmem>>, vector<1x16xf32>
    %3 = vector.broadcast %2 : vector<1x16xf32> to vector<128x16xf32>
    %4 = arith.mulf %1, %3 : vector<128x16xf32>
    %c0_3 = arith.constant 0 : index
    %c0_4 = arith.constant 0 : index
    %5 = vector.load %arg3[%c0_3, %c0_4] : memref<1x16xf32, #tpu.memory_space<vmem>>, vector<1x16xf32>
    %6 = vector.broadcast %5 : vector<1x16xf32> to vector<128x16xf32>
    %7 = arith.addf %4, %6 : vector<128x16xf32>
    %cst = arith.constant 0.000000e+00 : f32
    %8 = vector.broadcast %cst : f32 to vector<128x16xf32>
    %9 = arith.maximumf %7, %8 : vector<128x16xf32>
    %c0_5 = arith.constant 0 : index
    %c0_6 = arith.constant 0 : index
    %10 = vector.load %arg4[%c0_5, %c0_6] : memref<128x16xf32, #tpu.memory_space<vmem>>, vector<128x16xf32>
    tpu.vector_store %arg4[%c0_5, %c0_6], %9 {strides = array<i32>} : memref<128x16xf32, #tpu.memory_space<vmem>>, vector<128x16xf32>,
    return
  }
  func.func @transform_0(%arg0: i32) -> (i32, i32) {
    %c0_i32 = arith.constant 0 : i32
    %c0_i32_0 = arith.constant 0 : i32
    return %arg0, %c0_i32 : i32, i32
  }
  func.func @transform_1(%arg0: i32) -> (i32, i32) {
    %c0_i32 = arith.constant 0 : i32
    %c0_i32_0 = arith.constant 0 : i32
    %c0_i32_1 = arith.constant 0 : i32
    return %c0_i32, %c0_i32_0 : i32, i32
  }
  func.func @transform_2(%arg0: i32) -> (i32, i32) {
    %c0_i32 = arith.constant 0 : i32
    %c0_i32_0 = arith.constant 0 : i32
    %c0_i32_1 = arith.constant 0 : i32
    return %c0_i32, %c0_i32_0 : i32, i32
  }
  func.func @transform_3(%arg0: i32) -> (i32, i32) {
    %c0_i32 = arith.constant 0 : i32
    %c0_i32_0 = arith.constant 0 : i32
    return %arg0, %c0_i32 : i32, i32
  }
}

module attributes {stable_mosaic.version = 11 : i64} {
  func.func @_bn_relu_conv_kernel(%arg0: i32, %arg1: memref<128x32xbf16, #tpu.memory_space<vmem>>, %arg2: memref<1x32xf32, #tpu.memory_space<vmem>>, %arg3: memref<1x32xf32, #tpu.memory_space<vmem>>, %arg4: memref<32x16xbf16, #tpu.memory_space<vmem>>, %arg5: memref<1x16xf32, #tpu.memory_space<vmem>>, %arg6: memref<128x16xbf16, #tpu.memory_space<vmem>>, %arg7: memref<1x2x16xf32, #tpu.memory_space<vmem>>) attributes {dimension_semantics = [#tpu.dimension_semantics<parallel>], iteration_bounds = array<i64: 1>, scalar_prefetch = 0 : i64, scratch_operands = 0 : i64, tpu.core_type = #tpu.core_type<tc>, window_params = [{transform_indices = @transform_0, window_bounds = array<i64: 128, 32>}, {pipeline_mode = #tpu.pipeline_mode<synchronous>, transform_indices = @transform_1, window_bounds = array<i64: 1, 32>}, {pipeline_mode = #tpu.pipeline_mode<synchronous>, transform_indices = @transform_2, window_bounds = array<i64: 1, 32>}, {pipeline_mode = #tpu.pipeline_mode<synchronous>, transform_indices = @transform_3, window_bounds = array<i64: 32, 16>}, {pipeline_mode = #tpu.pipeline_mode<synchronous>, transform_indices = @transform_4, window_bounds = array<i64: 1, 16>}, {transform_indices = @transform_5, window_bounds = array<i64: 128, 16>}, {transform_indices = @transform_6, window_bounds = array<i64: 1, 2, 16>}]} {
    %c0 = arith.constant 0 : index
    %c0_0 = arith.constant 0 : index
    %0 = vector.load %arg1[%c0, %c0_0] : memref<128x32xbf16, #tpu.memory_space<vmem>>, vector<128x32xbf16>
    %1 = arith.extf %0 : vector<128x32xbf16> to vector<128x32xf32>
    %c0_1 = arith.constant 0 : index
    %c0_2 = arith.constant 0 : index
    %2 = vector.load %arg2[%c0_1, %c0_2] : memref<1x32xf32, #tpu.memory_space<vmem>>, vector<1x32xf32>
    %3 = vector.broadcast %2 : vector<1x32xf32> to vector<128x32xf32>
    %4 = arith.mulf %1, %3 : vector<128x32xf32>
    %c0_3 = arith.constant 0 : index
    %c0_4 = arith.constant 0 : index
    %5 = vector.load %arg3[%c0_3, %c0_4] : memref<1x32xf32, #tpu.memory_space<vmem>>, vector<1x32xf32>
    %6 = vector.broadcast %5 : vector<1x32xf32> to vector<128x32xf32>
    %7 = arith.addf %4, %6 : vector<128x32xf32>
    %cst = arith.constant 0.000000e+00 : f32
    %8 = vector.broadcast %cst : f32 to vector<128x32xf32>
    %9 = arith.maximumf %7, %8 : vector<128x32xf32>
    %10 = arith.truncf %9 : vector<128x32xf32> to vector<128x32xbf16>
    %c0_5 = arith.constant 0 : index
    %c0_6 = arith.constant 0 : index
    %11 = vector.load %arg4[%c0_5, %c0_6] : memref<32x16xbf16, #tpu.memory_space<vmem>>, vector<32x16xbf16>
    %cst_7 = arith.constant dense<0.000000e+00> : vector<128x16xf32>
    %12 = tpu.matmul %10, %11, %cst_7 {dimension_numbers = #tpu.dot_dimension_numbers<[1], [0], [0], [1], [0, 0, 1, 1], [], []>} : vector<128x32xbf16>, vector<32x16xbf16>, vector<128x16xf32> -> vector<128x16xf32>
    %c0_8 = arith.constant 0 : index
    %c0_9 = arith.constant 0 : index
    %13 = vector.load %arg5[%c0_8, %c0_9] : memref<1x16xf32, #tpu.memory_space<vmem>>, vector<1x16xf32>
    %14 = vector.broadcast %13 : vector<1x16xf32> to vector<128x16xf32>
    %15 = arith.addf %12, %14 : vector<128x16xf32>
    %16 = arith.truncf %15 : vector<128x16xf32> to vector<128x16xbf16>
    %c0_10 = arith.constant 0 : index
    %c0_11 = arith.constant 0 : index
    %17 = vector.load %arg6[%c0_10, %c0_11] : memref<128x16xbf16, #tpu.memory_space<vmem>>, vector<128x16xbf16>
    tpu.vector_store %arg6[%c0_10, %c0_11], %16 {strides = array<i32>} : memref<128x16xbf16, #tpu.memory_space<vmem>>, vector<128x16xbf16>,
    %cst_12 = arith.constant dense<0.000000e+00> : vector<16xf32>
    %18 = vector.multi_reduction <add>, %15, %cst_12 [0] : vector<128x16xf32> to vector<16xf32>
    %19 = vector.shape_cast %18 : vector<16xf32> to vector<1x16xf32>
    %20 = arith.mulf %15, %15 : vector<128x16xf32>
    %cst_13 = arith.constant dense<0.000000e+00> : vector<16xf32>
    %21 = vector.multi_reduction <add>, %20, %cst_13 [0] : vector<128x16xf32> to vector<16xf32>
    %22 = vector.shape_cast %21 : vector<16xf32> to vector<1x16xf32>
    %23 = tpu.concatenate %19, %22 in 0 : vector<1x16xf32>, vector<1x16xf32> -> vector<2x16xf32>
    %c0_14 = arith.constant 0 : index
    %c0_15 = arith.constant 0 : index
    %c0_16 = arith.constant 0 : index
    %24 = vector.load %arg7[%c0_14, %c0_15, %c0_16] : memref<1x2x16xf32, #tpu.memory_space<vmem>>, vector<1x2x16xf32>
    %25 = vector.shape_cast %24 : vector<1x2x16xf32> to vector<2x16xf32>
    %26 = vector.shape_cast %23 : vector<2x16xf32> to vector<1x2x16xf32>
    tpu.vector_store %arg7[%c0_14, %c0_15, %c0_16], %26 {strides = array<i32>} : memref<1x2x16xf32, #tpu.memory_space<vmem>>, vector<1x2x16xf32>,
    return
  }
  func.func @transform_0(%arg0: i32) -> (i32, i32) {
    %c0_i32 = arith.constant 0 : i32
    %c0_i32_0 = arith.constant 0 : i32
    return %arg0, %c0_i32 : i32, i32
  }
  func.func @transform_1(%arg0: i32) -> (i32, i32) {
    %c0_i32 = arith.constant 0 : i32
    %c0_i32_0 = arith.constant 0 : i32
    %c0_i32_1 = arith.constant 0 : i32
    return %c0_i32, %c0_i32_0 : i32, i32
  }
  func.func @transform_2(%arg0: i32) -> (i32, i32) {
    %c0_i32 = arith.constant 0 : i32
    %c0_i32_0 = arith.constant 0 : i32
    %c0_i32_1 = arith.constant 0 : i32
    return %c0_i32, %c0_i32_0 : i32, i32
  }
  func.func @transform_3(%arg0: i32) -> (i32, i32) {
    %c0_i32 = arith.constant 0 : i32
    %c0_i32_0 = arith.constant 0 : i32
    %c0_i32_1 = arith.constant 0 : i32
    return %c0_i32, %c0_i32_0 : i32, i32
  }
  func.func @transform_4(%arg0: i32) -> (i32, i32) {
    %c0_i32 = arith.constant 0 : i32
    %c0_i32_0 = arith.constant 0 : i32
    %c0_i32_1 = arith.constant 0 : i32
    return %c0_i32, %c0_i32_0 : i32, i32
  }
  func.func @transform_5(%arg0: i32) -> (i32, i32) {
    %c0_i32 = arith.constant 0 : i32
    %c0_i32_0 = arith.constant 0 : i32
    return %arg0, %c0_i32 : i32, i32
  }
  func.func @transform_6(%arg0: i32) -> (i32, i32, i32) {
    %c0_i32 = arith.constant 0 : i32
    %c0_i32_0 = arith.constant 0 : i32
    %c0_i32_1 = arith.constant 0 : i32
    return %arg0, %c0_i32, %c0_i32_0 : i32, i32, i32
  }
}

module attributes {stable_mosaic.version = 11 : i64} {
  func.func @_interp_layer0_kernel(%arg0: i32, %arg1: i32, %arg2: memref<1x64x3xf32, #tpu.memory_space<vmem>>, %arg3: memref<1x3x128xf32, #tpu.memory_space<vmem>>, %arg4: memref<1x128x32xbf16, #tpu.memory_space<vmem>>, %arg5: memref<1x64x8xf32, #tpu.memory_space<vmem>>, %arg6: memref<8x32xbf16, #tpu.memory_space<vmem>>, %arg7: memref<1x32xf32, #tpu.memory_space<vmem>>, %arg8: memref<1x64x32xbf16, #tpu.memory_space<vmem>>, %arg9: memref<1x2x32xf32, #tpu.memory_space<vmem>>) attributes {dimension_semantics = [#tpu.dimension_semantics<parallel>, #tpu.dimension_semantics<parallel>], iteration_bounds = array<i64: 2, 1>, scalar_prefetch = 0 : i64, scratch_operands = 0 : i64, tpu.core_type = #tpu.core_type<tc>, window_params = [{transform_indices = @transform_0, window_bounds = array<i64: 1, 64, 3>}, {transform_indices = @transform_1, window_bounds = array<i64: 1, 3, 128>}, {transform_indices = @transform_2, window_bounds = array<i64: 1, 128, 32>}, {transform_indices = @transform_3, window_bounds = array<i64: 1, 64, 8>}, {pipeline_mode = #tpu.pipeline_mode<synchronous>, transform_indices = @transform_4, window_bounds = array<i64: 8, 32>}, {pipeline_mode = #tpu.pipeline_mode<synchronous>, transform_indices = @transform_5, window_bounds = array<i64: 1, 32>}, {transform_indices = @transform_6, window_bounds = array<i64: 1, 64, 32>}, {transform_indices = @transform_7, window_bounds = array<i64: 1, 2, 32>}]} {
    %c0 = arith.constant 0 : index
    %c0_0 = arith.constant 0 : index
    %c0_1 = arith.constant 0 : index
    %0 = vector.load %arg2[%c0, %c0_0, %c0_1] : memref<1x64x3xf32, #tpu.memory_space<vmem>>, vector<1x64x3xf32>
    %1 = vector.shape_cast %0 : vector<1x64x3xf32> to vector<64x3xf32>
    %c0_2 = arith.constant 0 : index
    %c0_3 = arith.constant 0 : index
    %c0_4 = arith.constant 0 : index
    %2 = vector.load %arg3[%c0_2, %c0_3, %c0_4] : memref<1x3x128xf32, #tpu.memory_space<vmem>>, vector<1x3x128xf32>
    %3 = vector.shape_cast %2 : vector<1x3x128xf32> to vector<3x128xf32>
    %4 = vector.extract_strided_slice %1 {offsets = [0, 0], sizes = [64, 1], strides = [1, 1]} : vector<64x3xf32> to vector<64x1xf32>
    %5 = vector.extract_strided_slice %3 {offsets = [0, 0], sizes = [1, 128], strides = [1, 1]} : vector<3x128xf32> to vector<1x128xf32>
    %6 = vector.broadcast %4 : vector<64x1xf32> to vector<64x128xf32>
    %7 = vector.broadcast %5 : vector<1x128xf32> to vector<64x128xf32>
    %8 = arith.subf %6, %7 : vector<64x128xf32>
    %9 = arith.mulf %8, %8 : vector<64x128xf32>
    %10 = vector.extract_strided_slice %1 {offsets = [0, 1], sizes = [64, 1], strides = [1, 1]} : vector<64x3xf32> to vector<64x1xf32>
    %11 = vector.extract_strided_slice %3 {offsets = [1, 0], sizes = [1, 128], strides = [1, 1]} : vector<3x128xf32> to vector<1x128xf32>
    %12 = vector.broadcast %10 : vector<64x1xf32> to vector<64x128xf32>
    %13 = vector.broadcast %11 : vector<1x128xf32> to vector<64x128xf32>
    %14 = arith.subf %12, %13 : vector<64x128xf32>
    %15 = arith.mulf %14, %14 : vector<64x128xf32>
    %16 = arith.addf %9, %15 : vector<64x128xf32>
    %17 = vector.extract_strided_slice %1 {offsets = [0, 2], sizes = [64, 1], strides = [1, 1]} : vector<64x3xf32> to vector<64x1xf32>
    %18 = vector.extract_strided_slice %3 {offsets = [2, 0], sizes = [1, 128], strides = [1, 1]} : vector<3x128xf32> to vector<1x128xf32>
    %19 = vector.broadcast %17 : vector<64x1xf32> to vector<64x128xf32>
    %20 = vector.broadcast %18 : vector<1x128xf32> to vector<64x128xf32>
    %21 = arith.subf %19, %20 : vector<64x128xf32>
    %22 = arith.mulf %21, %21 : vector<64x128xf32>
    %23 = arith.addf %16, %22 : vector<64x128xf32>
    %24 = tpu.iota {dimensions = array<i32: 1>} : vector<64x128xi32>
    %cst = arith.constant 0.000000e+00 : f32
    %25 = vector.broadcast %cst : f32 to vector<64x128xf32>
    %cst_5 = arith.constant 0.000000e+00 : f32
    %26 = vector.broadcast %cst_5 : f32 to vector<64x1xf32>
    %cst_6 = arith.constant dense<0x7F800000> : vector<64xf32>
    %27 = vector.multi_reduction <minimumf>, %23, %cst_6 [1] : vector<64x128xf32> to vector<64xf32>
    %28 = vector.shape_cast %27 : vector<64xf32> to vector<64x1xf32>
    %29 = vector.broadcast %28 : vector<64x1xf32> to vector<64x128xf32>
    %30 = arith.cmpf oeq, %23, %29 : vector<64x128xf32>
    %c128_i32 = arith.constant 128 : i32
    %31 = vector.broadcast %c128_i32 : i32 to vector<64x128xi32>
    %32 = arith.select %30, %24, %31 : vector<64x128xi1>, vector<64x128xi32>
    %cst_7 = arith.constant dense<2147483647> : vector<64xi32>
    %33 = vector.multi_reduction <minsi>, %32, %cst_7 [1] : vector<64x128xi32> to vector<64xi32>
    %34 = vector.shape_cast %33 : vector<64xi32> to vector<64x1xi32>
    %35 = vector.broadcast %34 : vector<64x1xi32> to vector<64x128xi32>
    %36 = arith.cmpi eq, %24, %35 : vector<64x128xi32>
    %cst_8 = arith.constant 9.99999993E-9 : f32
    %37 = vector.broadcast %cst_8 : f32 to vector<64x1xf32>
    %38 = arith.addf %28, %37 : vector<64x1xf32>
    %39 = tpu.reciprocal %38 {approx = true} : vector<64x1xf32> -> vector<64x1xf32>
    %40 = arith.addf %26, %39 : vector<64x1xf32>
    %41 = vector.shape_cast %39 : vector<64x1xf32> to vector<64x1xf32>
    %42 = vector.broadcast %41 : vector<64x1xf32> to vector<64x128xf32>
    %43 = arith.select %36, %42, %25 : vector<64x128xi1>, vector<64x128xf32>
    %cst_9 = arith.constant 0x7F800000 : f32
    %44 = vector.broadcast %cst_9 : f32 to vector<64x128xf32>
    %45 = arith.select %36, %44, %23 : vector<64x128xi1>, vector<64x128xf32>
    %cst_10 = arith.constant dense<0x7F800000> : vector<64xf32>
    %46 = vector.multi_reduction <minimumf>, %45, %cst_10 [1] : vector<64x128xf32> to vector<64xf32>
    %47 = vector.shape_cast %46 : vector<64xf32> to vector<64x1xf32>
    %48 = vector.broadcast %47 : vector<64x1xf32> to vector<64x128xf32>
    %49 = arith.cmpf oeq, %45, %48 : vector<64x128xf32>
    %c128_i32_11 = arith.constant 128 : i32
    %50 = vector.broadcast %c128_i32_11 : i32 to vector<64x128xi32>
    %51 = arith.select %49, %24, %50 : vector<64x128xi1>, vector<64x128xi32>
    %cst_12 = arith.constant dense<2147483647> : vector<64xi32>
    %52 = vector.multi_reduction <minsi>, %51, %cst_12 [1] : vector<64x128xi32> to vector<64xi32>
    %53 = vector.shape_cast %52 : vector<64xi32> to vector<64x1xi32>
    %54 = vector.broadcast %53 : vector<64x1xi32> to vector<64x128xi32>
    %55 = arith.cmpi eq, %24, %54 : vector<64x128xi32>
    %cst_13 = arith.constant 9.99999993E-9 : f32
    %56 = vector.broadcast %cst_13 : f32 to vector<64x1xf32>
    %57 = arith.addf %47, %56 : vector<64x1xf32>
    %58 = tpu.reciprocal %57 {approx = true} : vector<64x1xf32> -> vector<64x1xf32>
    %59 = arith.addf %40, %58 : vector<64x1xf32>
    %60 = vector.shape_cast %58 : vector<64x1xf32> to vector<64x1xf32>
    %61 = vector.broadcast %60 : vector<64x1xf32> to vector<64x128xf32>
    %62 = arith.select %55, %61, %43 : vector<64x128xi1>, vector<64x128xf32>
    %cst_14 = arith.constant 0x7F800000 : f32
    %63 = vector.broadcast %cst_14 : f32 to vector<64x128xf32>
    %64 = arith.select %55, %63, %45 : vector<64x128xi1>, vector<64x128xf32>
    %cst_15 = arith.constant dense<0x7F800000> : vector<64xf32>
    %65 = vector.multi_reduction <minimumf>, %64, %cst_15 [1] : vector<64x128xf32> to vector<64xf32>
    %66 = vector.shape_cast %65 : vector<64xf32> to vector<64x1xf32>
    %67 = vector.broadcast %66 : vector<64x1xf32> to vector<64x128xf32>
    %68 = arith.cmpf oeq, %64, %67 : vector<64x128xf32>
    %c128_i32_16 = arith.constant 128 : i32
    %69 = vector.broadcast %c128_i32_16 : i32 to vector<64x128xi32>
    %70 = arith.select %68, %24, %69 : vector<64x128xi1>, vector<64x128xi32>
    %cst_17 = arith.constant dense<2147483647> : vector<64xi32>
    %71 = vector.multi_reduction <minsi>, %70, %cst_17 [1] : vector<64x128xi32> to vector<64xi32>
    %72 = vector.shape_cast %71 : vector<64xi32> to vector<64x1xi32>
    %73 = vector.broadcast %72 : vector<64x1xi32> to vector<64x128xi32>
    %74 = arith.cmpi eq, %24, %73 : vector<64x128xi32>
    %cst_18 = arith.constant 9.99999993E-9 : f32
    %75 = vector.broadcast %cst_18 : f32 to vector<64x1xf32>
    %76 = arith.addf %66, %75 : vector<64x1xf32>
    %77 = tpu.reciprocal %76 {approx = true} : vector<64x1xf32> -> vector<64x1xf32>
    %78 = arith.addf %59, %77 : vector<64x1xf32>
    %79 = vector.shape_cast %77 : vector<64x1xf32> to vector<64x1xf32>
    %80 = vector.broadcast %79 : vector<64x1xf32> to vector<64x128xf32>
    %81 = arith.select %74, %80, %62 : vector<64x128xi1>, vector<64x128xf32>
    %82 = tpu.reciprocal %78 : vector<64x1xf32> -> vector<64x1xf32>
    %83 = vector.broadcast %82 : vector<64x1xf32> to vector<64x128xf32>
    %84 = arith.mulf %81, %83 : vector<64x128xf32>
    %85 = arith.truncf %84 : vector<64x128xf32> to vector<64x128xbf16>
    %c0_19 = arith.constant 0 : index
    %c0_20 = arith.constant 0 : index
    %c0_21 = arith.constant 0 : index
    %86 = vector.load %arg4[%c0_19, %c0_20, %c0_21] : memref<1x128x32xbf16, #tpu.memory_space<vmem>>, vector<1x128x32xbf16>
    %87 = vector.shape_cast %86 : vector<1x128x32xbf16> to vector<128x32xbf16>
    %cst_22 = arith.constant dense<0.000000e+00> : vector<64x32xf32>
    %88 = tpu.matmul %85, %87, %cst_22 {dimension_numbers = #tpu.dot_dimension_numbers<[1], [0], [0], [1], [0, 0, 1, 1], [], []>} : vector<64x128xbf16>, vector<128x32xbf16>, vector<64x32xf32> -> vector<64x32xf32>
    %c0_23 = arith.constant 0 : index
    %c0_24 = arith.constant 0 : index
    %c0_25 = arith.constant 0 : index
    %89 = vector.load %arg5[%c0_23, %c0_24, %c0_25] : memref<1x64x8xf32, #tpu.memory_space<vmem>>, vector<1x64x8xf32>
    %90 = vector.shape_cast %89 : vector<1x64x8xf32> to vector<64x8xf32>
    %91 = arith.truncf %90 : vector<64x8xf32> to vector<64x8xbf16>
    %c0_26 = arith.constant 0 : index
    %c0_27 = arith.constant 0 : index
    %92 = vector.load %arg6[%c0_26, %c0_27] : memref<8x32xbf16, #tpu.memory_space<vmem>>, vector<8x32xbf16>
    %cst_28 = arith.constant dense<0.000000e+00> : vector<64x32xf32>
    %93 = tpu.matmul %91, %92, %cst_28 {dimension_numbers = #tpu.dot_dimension_numbers<[1], [0], [0], [1], [0, 0, 1, 1], [], []>} : vector<64x8xbf16>, vector<8x32xbf16>, vector<64x32xf32> -> vector<64x32xf32>
    %94 = arith.addf %88, %93 : vector<64x32xf32>
    %c0_29 = arith.constant 0 : index
    %c0_30 = arith.constant 0 : index
    %95 = vector.load %arg7[%c0_29, %c0_30] : memref<1x32xf32, #tpu.memory_space<vmem>>, vector<1x32xf32>
    %96 = vector.broadcast %95 : vector<1x32xf32> to vector<64x32xf32>
    %97 = arith.addf %94, %96 : vector<64x32xf32>
    %98 = arith.truncf %97 : vector<64x32xf32> to vector<64x32xbf16>
    %c0_31 = arith.constant 0 : index
    %c0_32 = arith.constant 0 : index
    %c0_33 = arith.constant 0 : index
    %99 = vector.load %arg8[%c0_31, %c0_32, %c0_33] : memref<1x64x32xbf16, #tpu.memory_space<vmem>>, vector<1x64x32xbf16>
    %100 = vector.shape_cast %99 : vector<1x64x32xbf16> to vector<64x32xbf16>
    %101 = vector.shape_cast %98 : vector<64x32xbf16> to vector<1x64x32xbf16>
    tpu.vector_store %arg8[%c0_31, %c0_32, %c0_33], %101 {strides = array<i32>} : memref<1x64x32xbf16, #tpu.memory_space<vmem>>, vector<1x64x32xbf16>,
    %cst_34 = arith.constant dense<0.000000e+00> : vector<32xf32>
    %102 = vector.multi_reduction <add>, %97, %cst_34 [0] : vector<64x32xf32> to vector<32xf32>
    %103 = vector.shape_cast %102 : vector<32xf32> to vector<1x32xf32>
    %104 = arith.mulf %97, %97 : vector<64x32xf32>
    %cst_35 = arith.constant dense<0.000000e+00> : vector<32xf32>
    %105 = vector.multi_reduction <add>, %104, %cst_35 [0] : vector<64x32xf32> to vector<32xf32>
    %106 = vector.shape_cast %105 : vector<32xf32> to vector<1x32xf32>
    %107 = tpu.concatenate %103, %106 in 0 : vector<1x32xf32>, vector<1x32xf32> -> vector<2x32xf32>
    %c0_36 = arith.constant 0 : index
    %c0_37 = arith.constant 0 : index
    %c0_38 = arith.constant 0 : index
    %108 = vector.load %arg9[%c0_36, %c0_37, %c0_38] : memref<1x2x32xf32, #tpu.memory_space<vmem>>, vector<1x2x32xf32>
    %109 = vector.shape_cast %108 : vector<1x2x32xf32> to vector<2x32xf32>
    %110 = vector.shape_cast %107 : vector<2x32xf32> to vector<1x2x32xf32>
    tpu.vector_store %arg9[%c0_36, %c0_37, %c0_38], %110 {strides = array<i32>} : memref<1x2x32xf32, #tpu.memory_space<vmem>>, vector<1x2x32xf32>,
    return
  }
  func.func @transform_0(%arg0: i32, %arg1: i32) -> (i32, i32, i32) {
    %c0_i32 = arith.constant 0 : i32
    %c0_i32_0 = arith.constant 0 : i32
    return %arg0, %arg1, %c0_i32 : i32, i32, i32
  }
  func.func @transform_1(%arg0: i32, %arg1: i32) -> (i32, i32, i32) {
    %c0_i32 = arith.constant 0 : i32
    %c0_i32_0 = arith.constant 0 : i32
    %c0_i32_1 = arith.constant 0 : i32
    return %arg0, %c0_i32, %c0_i32_0 : i32, i32, i32
  }
  func.func @transform_2(%arg0: i32, %arg1: i32) -> (i32, i32, i32) {
    %c0_i32 = arith.constant 0 : i32
    %c0_i32_0 = arith.constant 0 : i32
    %c0_i32_1 = arith.constant 0 : i32
    return %arg0, %c0_i32, %c0_i32_0 : i32, i32, i32
  }
  func.func @transform_3(%arg0: i32, %arg1: i32) -> (i32, i32, i32) {
    %c0_i32 = arith.constant 0 : i32
    %c0_i32_0 = arith.constant 0 : i32
    return %arg0, %arg1, %c0_i32 : i32, i32, i32
  }
  func.func @transform_4(%arg0: i32, %arg1: i32) -> (i32, i32) {
    %c0_i32 = arith.constant 0 : i32
    %c0_i32_0 = arith.constant 0 : i32
    %c0_i32_1 = arith.constant 0 : i32
    return %c0_i32, %c0_i32_0 : i32, i32
  }
  func.func @transform_5(%arg0: i32, %arg1: i32) -> (i32, i32) {
    %c0_i32 = arith.constant 0 : i32
    %c0_i32_0 = arith.constant 0 : i32
    %c0_i32_1 = arith.constant 0 : i32
    return %c0_i32, %c0_i32_0 : i32, i32
  }
  func.func @transform_6(%arg0: i32, %arg1: i32) -> (i32, i32, i32) {
    %c0_i32 = arith.constant 0 : i32
    %c0_i32_0 = arith.constant 0 : i32
    return %arg0, %arg1, %c0_i32 : i32, i32, i32
  }
  func.func @transform_7(%arg0: i32, %arg1: i32) -> (i32, i32, i32) {
    %c1_i32 = arith.constant 1 : i32
    %0 = arith.muli %arg0, %c1_i32 : i32
    %1 = arith.addi %0, %arg1 : i32
    %c0_i32 = arith.constant 0 : i32
    %c0_i32_0 = arith.constant 0 : i32
    %c0_i32_1 = arith.constant 0 : i32
    return %1, %c0_i32, %c0_i32_0 : i32, i32, i32
  }
}

</mosaic_0001>

<llo_original>
// kernel: pointnet_feature_propagation.5
$region0: #{pointnet_feature_propagation.5}
  #allocation0 [shape = 'u32[]', space=smem, size = 0x4, offset = 0x4, fixed_abs, tag = 'smem constant byte address 0x4 - core index']
  #allocation1 [shape = 'u32[72,128]{1,0:T(1,128)}', space=vmem, size = 0x9000, scoped, tag = 'internal scratch']
  %s0 = inlined_call_operand.vmem [shape: bf16[128,16], index: 0, kind: input, shape index: {}]
  %s1 = inlined_call_operand.vmem [shape: f32[1,16], index: 1, kind: input, shape index: {}]
  %s2 = inlined_call_operand.vmem [shape: f32[1,16], index: 2, kind: input, shape index: {}]
  %s3 = inlined_call_operand.vmem [shape: f32[128,16], index: 3, kind: output, shape index: {}]
  %s4 = sld [smem:[#allocation0]]
  $region22: #{pointnet_feature_propagation.5} parent=0
    _
  %s6 = ssub.s32 1, %s4
  %s7 = scalar_select 0, %s6, %s4
  // Predicated region
  $region2: #{pointnet_feature_propagation.5} parent=0 // pred_check
    _
  $region3: #{pointnet_feature_propagation.5} parent=0 // pred_check_branch
    %9 = sbr.rel (0) target = $region5
  $region4: #{pointnet_feature_propagation.5} parent=0 // pred_region
    _
  $region5: #{pointnet_feature_propagation.5} parent=0 // pred_fallthru
    _
  // Predicated region
  $region6: #{pointnet_feature_propagation.5} parent=0 // pred_check
    _
  $region7: #{pointnet_feature_propagation.5} parent=0 // pred_check_branch
    %11 = sbr.rel (0) target = $region9
  $region8: #{pointnet_feature_propagation.5} parent=0 // pred_region
    _
  $region9: #{pointnet_feature_propagation.5} parent=0 // pred_fallthru
    _
  // Predicated region
  $region10: #{pointnet_feature_propagation.5} parent=0 // pred_check
    _
  $region11: #{pointnet_feature_propagation.5} parent=0 // pred_check_branch
    %13 = sbr.rel (0) target = $region13
  $region12: #{pointnet_feature_propagation.5} parent=0 // pred_region
    _
  $region13: #{pointnet_feature_propagation.5} parent=0 // pred_fallthru
    _
  %v14 = vld [vmem:[%s0] sm:$0xf]
  %v15 = vld [vmem:[%s0 + $0x4] sm:$0xf]
  %v16 = vld [vmem:[%s0 + $0x8] sm:$0xf]
  %v17 = vld [vmem:[%s0 + $0xc] sm:$0xf]
  %v18 = vld [vmem:[%s0 + $0x10] sm:$0xf]
  %v19 = vld [vmem:[%s0 + $0x14] sm:$0xf]
  %v20 = vld [vmem:[%s0 + $0x18] sm:$0xf]
  %v21 = vld [vmem:[%s0 + $0x1c] sm:$0xf]
  %v22 = vld [vmem:[%s0 + $0x20] sm:$0xf]
  %v23 = vld [vmem:[%s0 + $0x24] sm:$0xf]
  %v24 = vld [vmem:[%s0 + $0x28] sm:$0xf]
  %v25 = vld [vmem:[%s0 + $0x2c] sm:$0xf]
  %v26 = vld [vmem:[%s0 + $0x30] sm:$0xf]
  %v27 = vld [vmem:[%s0 + $0x34] sm:$0xf]
  %v28 = vld [vmem:[%s0 + $0x38] sm:$0xf]
  %v29 = vld [vmem:[%s0 + $0x3c] sm:$0xf]
  %v30 = vunpack.c.l.bf16 %v14
  %v31 = vunpack.c.l.bf16 %v15
  %v32 = vunpack.c.l.bf16 %v16
  %v33 = vunpack.c.l.bf16 %v17
  %v34 = vunpack.c.l.bf16 %v18
  %v35 = vunpack.c.l.bf16 %v19
  %v36 = vunpack.c.l.bf16 %v20
  %v37 = vunpack.c.l.bf16 %v21
  %v38 = vunpack.c.l.bf16 %v22
  %v39 = vunpack.c.l.bf16 %v23
  %v40 = vunpack.c.l.bf16 %v24
  %v41 = vunpack.c.l.bf16 %v25
  %v42 = vunpack.c.l.bf16 %v26
  %v43 = vunpack.c.l.bf16 %v27
  %v44 = vunpack.c.l.bf16 %v28
  %v45 = vunpack.c.l.bf16 %v29
  %v46 = vld [vmem:[%s1] sm:$0x1]
  %v48 = vperm.slane %v46, 0
  %v50 = vmul.f32 %v30, %v48
  %v51 = vmul.f32 %v31, %v48
  %v52 = vmul.f32 %v32, %v48
  %v53 = vmul.f32 %v33, %v48
  %v54 = vmul.f32 %v34, %v48
  %v55 = vmul.f32 %v35, %v48
  %v56 = vmul.f32 %v36, %v48
  %v57 = vmul.f32 %v37, %v48
  %v58 = vmul.f32 %v38, %v48
  %v59 = vmul.f32 %v39, %v48
  %v60 = vmul.f32 %v40, %v48
  %v61 = vmul.f32 %v41, %v48
  %v62 = vmul.f32 %v42, %v48
  %v63 = vmul.f32 %v43, %v48
  %v64 = vmul.f32 %v44, %v48
  %v65 = vmul.f32 %v45, %v48
  %v66 = vld [vmem:[%s2] sm:$0x1]
  %v68 = vperm.slane %v66, 0
  %v70 = vadd.f32 %v50, %v68
  %v71 = vadd.f32 %v51, %v68
  %v72 = vadd.f32 %v52, %v68
  %v73 = vadd.f32 %v53, %v68
  %v74 = vadd.f32 %v54, %v68
  %v75 = vadd.f32 %v55, %v68
  %v76 = vadd.f32 %v56, %v68
  %v77 = vadd.f32 %v57, %v68
  %v78 = vadd.f32 %v58, %v68
  %v79 = vadd.f32 %v59, %v68
  %v80 = vadd.f32 %v60, %v68
  %v81 = vadd.f32 %v61, %v68
  %v82 = vadd.f32 %v62, %v68
  %v83 = vadd.f32 %v63, %v68
  %v84 = vadd.f32 %v64, %v68
  %v85 = vadd.f32 %v65, %v68
  %v86 = vmax.f32 %v70, 0.0
  %v87 = vmax.f32 %v71, 0.0
  %v88 = vmax.f32 %v72, 0.0
  %v89 = vmax.f32 %v73, 0.0
  %v90 = vmax.f32 %v74, 0.0
  %v91 = vmax.f32 %v75, 0.0
  %v92 = vmax.f32 %v76, 0.0
  %v93 = vmax.f32 %v77, 0.0
  %v94 = vmax.f32 %v78, 0.0
  %v95 = vmax.f32 %v79, 0.0
  %v96 = vmax.f32 %v80, 0.0
  %v97 = vmax.f32 %v81, 0.0
  %v98 = vmax.f32 %v82, 0.0
  %v99 = vmax.f32 %v83, 0.0
  %v100 = vmax.f32 %v84, 0.0
  %v101 = vmax.f32 %v85, 0.0
  %vm102 = vcmask 130048
  %103 = vst.msk [vmem:[%s3] sm:$0xff] %vm102, %v86
  %104 = vst.msk [vmem:[%s3 + $0x8] sm:$0xff] %vm102, %v87
  %105 = vst.msk [vmem:[%s3 + $0x10] sm:$0xff] %vm102, %v88
  %106 = vst.msk [vmem:[%s3 + $0x18] sm:$0xff] %vm102, %v89
  %107 = vst.msk [vmem:[%s3 + $0x20] sm:$0xff] %vm102, %v90
  %108 = vst.msk [vmem:[%s3 + $0x28] sm:$0xff] %vm102, %v91
  %109 = vst.msk [vmem:[%s3 + $0x30] sm:$0xff] %vm102, %v92
  %110 = vst.msk [vmem:[%s3 + $0x38] sm:$0xff] %vm102, %v93
  %111 = vst.msk [vmem:[%s3 + $0x40] sm:$0xff] %vm102, %v94
  %112 = vst.msk [vmem:[%s3 + $0x48] sm:$0xff] %vm102, %v95
  %113 = vst.msk [vmem:[%s3 + $0x50] sm:$0xff] %vm102, %v96
  %114 = vst.msk [vmem:[%s3 + $0x58] sm:$0xff] %vm102, %v97
  %115 = vst.msk [vmem:[%s3 + $0x60] sm:$0xff] %vm102, %v98
  %116 = vst.msk [vmem:[%s3 + $0x68] sm:$0xff] %vm102, %v99
  %117 = vst.msk [vmem:[%s3 + $0x70] sm:$0xff] %vm102, %v100
  %118 = vst.msk [vmem:[%s3 + $0x78] sm:$0xff] %vm102, %v101
  // Predicated region
  $region14: #{pointnet_feature_propagation.5} parent=0 // pred_check
    _
  $region15: #{pointnet_feature_propagation.5} parent=0 // pred_check_branch
    %120 = sbr.rel (0) target = $region17
  $region16: #{pointnet_feature_propagation.5} parent=0 // pred_region
    _
  $region17: #{pointnet_feature_propagation.5} parent=0 // pred_fallthru
    _
  // Predicated region
  $region18: #{pointnet_feature_propagation.5} parent=0 // pred_check
    _
  $region19: #{pointnet_feature_propagation.5} parent=0 // pred_check_branch
    %122 = sbr.rel (0) target = $region21
  $region20: #{pointnet_feature_propagation.5} parent=0 // pred_region
    _
  $region21: #{pointnet_feature_propagation.5} parent=0 // pred_fallthru
    _

// kernel: pointnet_feature_propagation.4
$region0: #{pointnet_feature_propagation.4}
  #allocation0 [shape = 'u32[]', space=smem, size = 0x4, offset = 0x4, fixed_abs, tag = 'smem constant byte address 0x4 - core index']
  #allocation1 [shape = 'u32[72,128]{1,0:T(1,128)}', space=vmem, size = 0x9000, scoped, tag = 'internal scratch']
  %s0 = inlined_call_operand.vmem [shape: bf16[128,32], index: 0, kind: input, shape index: {}]
  %s1 = inlined_call_operand.vmem [shape: f32[1,32], index: 1, kind: input, shape index: {}]
  %s2 = inlined_call_operand.vmem [shape: f32[1,32], index: 2, kind: input, shape index: {}]
  %s3 = inlined_call_operand.vmem [shape: bf16[32,16], index: 3, kind: input, shape index: {}]
  %s4 = inlined_call_operand.vmem [shape: f32[1,16], index: 4, kind: input, shape index: {}]
  %s5 = inlined_call_operand.vmem [shape: bf16[128,16], index: 5, kind: output, shape index: {0}]
  %s6 = inlined_call_operand.vmem [shape: f32[1,2,16], index: 6, kind: output, shape index: {1}]
  %7 = xla_tuple %s5, %s6
  %s8 = sld [smem:[#allocation0]]
  $region38: #{pointnet_feature_propagation.4} parent=0
    _
  %s10 = ssub.s32 1, %s8
  %s11 = scalar_select 0, %s10, %s8
  // Predicated region
  $region2: #{pointnet_feature_propagation.4} parent=0 // pred_check
    _
  $region3: #{pointnet_feature_propagation.4} parent=0 // pred_check_branch
    %13 = sbr.rel (0) target = $region5
  $region4: #{pointnet_feature_propagation.4} parent=0 // pred_region
    _
  $region5: #{pointnet_feature_propagation.4} parent=0 // pred_fallthru
    _
  // Predicated region
  $region6: #{pointnet_feature_propagation.4} parent=0 // pred_check
    _
  $region7: #{pointnet_feature_propagation.4} parent=0 // pred_check_branch
    %15 = sbr.rel (0) target = $region9
  $region8: #{pointnet_feature_propagation.4} parent=0 // pred_region
    _
  $region9: #{pointnet_feature_propagation.4} parent=0 // pred_fallthru
    _
  // Predicated region
  $region10: #{pointnet_feature_propagation.4} parent=0 // pred_check
    _
  $region11: #{pointnet_feature_propagation.4} parent=0 // pred_check_branch
    %17 = sbr.rel (0) target = $region13
  $region12: #{pointnet_feature_propagation.4} parent=0 // pred_region
    _
  $region13: #{pointnet_feature_propagation.4} parent=0 // pred_fallthru
    _
  // Predicated region
  $region14: #{pointnet_feature_propagation.4} parent=0 // pred_check
    _
  $region15: #{pointnet_feature_propagation.4} parent=0 // pred_check_branch
    %19 = sbr.rel (0) target = $region17
  $region16: #{pointnet_feature_propagation.4} parent=0 // pred_region
    _
  $region17: #{pointnet_feature_propagation.4} parent=0 // pred_fallthru
    _
  // Predicated region
  $region18: #{pointnet_feature_propagation.4} parent=0 // pred_check
    _
  $region19: #{pointnet_feature_propagation.4} parent=0 // pred_check_branch
    %21 = sbr.rel (0) target = $region21
  $region20: #{pointnet_feature_propagation.4} parent=0 // pred_region
    _
  $region21: #{pointnet_feature_propagation.4} parent=0 // pred_fallthru
    _
  %v23 = vld [vmem:[%s0] sm:$0xf]
  %v24 = vld [vmem:[%s0 + $0x4] sm:$0xf]
  %v25 = vld [vmem:[%s0 + $0x8] sm:$0xf]
  %v26 = vld [vmem:[%s0 + $0xc] sm:$0xf]
  %v27 = vld [vmem:[%s0 + $0x10] sm:$0xf]
  %v28 = vld [vmem:[%s0 + $0x14] sm:$0xf]
  %v29 = vld [vmem:[%s0 + $0x18] sm:$0xf]
  %v30 = vld [vmem:[%s0 + $0x1c] sm:$0xf]
  %v31 = vld [vmem:[%s0 + $0x20] sm:$0xf]
  %v32 = vld [vmem:[%s0 + $0x24] sm:$0xf]
  %v33 = vld [vmem:[%s0 + $0x28] sm:$0xf]
  %v34 = vld [vmem:[%s0 + $0x2c] sm:$0xf]
  %v35 = vld [vmem:[%s0 + $0x30] sm:$0xf]
  %v36 = vld [vmem:[%s0 + $0x34] sm:$0xf]
  %v37 = vld [vmem:[%s0 + $0x38] sm:$0xf]
  %v38 = vld [vmem:[%s0 + $0x3c] sm:$0xf]
  %v39 = vunpack.c.l.bf16 %v23
  %v40 = vunpack.c.l.bf16 %v24
  %v41 = vunpack.c.l.bf16 %v25
  %v42 = vunpack.c.l.bf16 %v26
  %v43 = vunpack.c.l.bf16 %v27
  %v44 = vunpack.c.l.bf16 %v28
  %v45 = vunpack.c.l.bf16 %v29
  %v46 = vunpack.c.l.bf16 %v30
  %v47 = vunpack.c.l.bf16 %v31
  %v48 = vunpack.c.l.bf16 %v32
  %v49 = vunpack.c.l.bf16 %v33
  %v50 = vunpack.c.l.bf16 %v34
  %v51 = vunpack.c.l.bf16 %v35
  %v52 = vunpack.c.l.bf16 %v36
  %v53 = vunpack.c.l.bf16 %v37
  %v54 = vunpack.c.l.bf16 %v38
  %v55 = vld [vmem:[%s1] sm:$0x1]
  %v57 = vperm.slane %v55, 0
  %v59 = vmul.f32 %v39, %v57
  %v60 = vmul.f32 %v40, %v57
  %v61 = vmul.f32 %v41, %v57
  %v62 = vmul.f32 %v42, %v57
  %v63 = vmul.f32 %v43, %v57
  %v64 = vmul.f32 %v44, %v57
  %v65 = vmul.f32 %v45, %v57
  %v66 = vmul.f32 %v46, %v57
  %v67 = vmul.f32 %v47, %v57
  %v68 = vmul.f32 %v48, %v57
  %v69 = vmul.f32 %v49, %v57
  %v70 = vmul.f32 %v50, %v57
  %v71 = vmul.f32 %v51, %v57
  %v72 = vmul.f32 %v52, %v57
  %v73 = vmul.f32 %v53, %v57
  %v74 = vmul.f32 %v54, %v57
  %v75 = vld [vmem:[%s2] sm:$0x1]
  %v77 = vperm.slane %v75, 0
  %v79 = vadd.f32 %v59, %v77
  %v80 = vadd.f32 %v60, %v77
  %v81 = vadd.f32 %v61, %v77
  %v82 = vadd.f32 %v62, %v77
  %v83 = vadd.f32 %v63, %v77
  %v84 = vadd.f32 %v64, %v77
  %v85 = vadd.f32 %v65, %v77
  %v86 = vadd.f32 %v66, %v77
  %v87 = vadd.f32 %v67, %v77
  %v88 = vadd.f32 %v68, %v77
  %v89 = vadd.f32 %v69, %v77
  %v90 = vadd.f32 %v70, %v77
  %v91 = vadd.f32 %v71, %v77
  %v92 = vadd.f32 %v72, %v77
  %v93 = vadd.f32 %v73, %v77
  %v94 = vadd.f32 %v74, %v77
  %v95 = vmax.f32 %v79, 0.0
  %v96 = vmax.f32 %v80, 0.0
  %v97 = vmax.f32 %v81, 0.0
  %v98 = vmax.f32 %v82, 0.0
  %v99 = vmax.f32 %v83, 0.0
  %v100 = vmax.f32 %v84, 0.0
  %v101 = vmax.f32 %v85, 0.0
  %v102 = vmax.f32 %v86, 0.0
  %v103 = vmax.f32 %v87, 0.0
  %v104 = vmax.f32 %v88, 0.0
  %v105 = vmax.f32 %v89, 0.0
  %v106 = vmax.f32 %v90, 0.0
  %v107 = vmax.f32 %v91, 0.0
  %v108 = vmax.f32 %v92, 0.0
  %v109 = vmax.f32 %v93, 0.0
  %v110 = vmax.f32 %v94, 0.0
  %v111 = vpack.c.bf16 %v96, %v95
  %v112 = vpack.c.bf16 %v98, %v97
  %v113 = vpack.c.bf16 %v100, %v99
  %v114 = vpack.c.bf16 %v102, %v101
  %v115 = vpack.c.bf16 %v104, %v103
  %v116 = vpack.c.bf16 %v106, %v105
  %v117 = vpack.c.bf16 %v108, %v107
  %v118 = vpack.c.bf16 %v110, %v109
  %v119 = vld [vmem:[%s3] sm:$0xf]
  %v120 = vld [vmem:[%s3 + $0x4] sm:$0xf]
  %v121 = vld [vmem:[%s3 + $0x8] sm:$0xf]
  %v122 = vld [vmem:[%s3 + $0xc] sm:$0xf]
  %v123 = vld [vmem:[%s4] sm:$0x1]
  %v125 = vperm.slane %v123, 0
  %v131 = vunpack.c.l.b16 %v119
  %v132 = vunpack.c.l.b16 %v120
  %v133 = vunpack.c.l.b16 %v121
  %v134 = vunpack.c.l.b16 %v122
  %v135 = vpack.c.b16 %v132, %v131
  %v136 = vpack.c.b16 %v134, %v133
  %vm139 = vcmask 261120
  %v141 = vsel %vm139, %v111, 0
  %v144 = vsel %vm139, %v112, 0
  %v147 = vsel %vm139, %v113, 0
  %v150 = vsel %vm139, %v114, 0
  %v153 = vsel %vm139, %v115, 0
  %v156 = vsel %vm139, %v116, 0
  %v159 = vsel %vm139, %v117, 0
  %v162 = vsel %vm139, %v118, 0
  %164 = vmatpush.bf16.msra.mxu0 0
  %165 = vmatpush.bf16.msra.mxu0 0
  %166 = vmatpush.bf16.msra.mxu0 0
  %167 = vmatpush.bf16.msra.mxu0 0
  %168 = vmatpush.bf16.msra.mxu0 0
  %169 = vmatpush.bf16.msra.mxu0 0
  %170 = vmatpush.bf16.msra.mxu0 %v136
  %171 = vmatpush.bf16.msra.mxu0 %v135
  %172 = vmatmul.bf16.gmra.mxu0 %v141
  %v173 = vpop.f32.mrf.mxu0
  %v174 = vadd.f32 %v125, %v173
  %v175 = vpop.f32.mrf.mxu0
  %v176 = vadd.f32 %v125, %v175
  %177 = vmatmul.bf16.gmra.mxu0 %v144
  %v178 = vpop.f32.mrf.mxu0
  %v179 = vadd.f32 %v125, %v178
  %v180 = vpop.f32.mrf.mxu0
  %v181 = vadd.f32 %v125, %v180
  %182 = vmatmul.bf16.gmra.mxu0 %v147
  %v183 = vpop.f32.mrf.mxu0
  %v184 = vadd.f32 %v125, %v183
  %v185 = vpop.f32.mrf.mxu0
  %v186 = vadd.f32 %v125, %v185
  %187 = vmatmul.bf16.gmra.mxu0 %v150
  %v188 = vpop.f32.mrf.mxu0
  %v189 = vadd.f32 %v125, %v188
  %v190 = vpop.f32.mrf.mxu0
  %v191 = vadd.f32 %v125, %v190
  %192 = vmatmul.bf16.gmra.mxu0 %v153
  %v193 = vpop.f32.mrf.mxu0
  %v194 = vadd.f32 %v125, %v193
  %v195 = vpop.f32.mrf.mxu0
  %v196 = vadd.f32 %v125, %v195
  %197 = vmatmul.bf16.gmra.mxu0 %v156
  %v198 = vpop.f32.mrf.mxu0
  %v199 = vadd.f32 %v125, %v198
  %v200 = vpop.f32.mrf.mxu0
  %v201 = vadd.f32 %v125, %v200
  %202 = vmatmul.bf16.gmra.mxu0 %v159
  %v203 = vpop.f32.mrf.mxu0
  %v204 = vadd.f32 %v125, %v203
  %v205 = vpop.f32.mrf.mxu0
  %v206 = vadd.f32 %v125, %v205
  %207 = vmatmul.bf16.gmra.mxu0 %v162
  %v208 = vpop.f32.mrf.mxu0
  %v209 = vadd.f32 %v125, %v208
  %v210 = vpop.f32.mrf.mxu0
  %v211 = vadd.f32 %v125, %v210
  %212 = vdwg.mxu0
  %v213 = vpack.c.bf16 %v174, %v174
  %v214 = vpack.c.bf16 %v176, %v176
  %v215 = vpack.c.bf16 %v179, %v179
  %v216 = vpack.c.bf16 %v181, %v181
  %v217 = vpack.c.bf16 %v184, %v184
  %v218 = vpack.c.bf16 %v186, %v186
  %v219 = vpack.c.bf16 %v189, %v189
  %v220 = vpack.c.bf16 %v191, %v191
  %v221 = vpack.c.bf16 %v194, %v194
  %v222 = vpack.c.bf16 %v196, %v196
  %v223 = vpack.c.bf16 %v199, %v199
  %v224 = vpack.c.bf16 %v201, %v201
  %v225 = vpack.c.bf16 %v204, %v204
  %v226 = vpack.c.bf16 %v206, %v206
  %v227 = vpack.c.bf16 %v209, %v209
  %v228 = vpack.c.bf16 %v211, %v211
  %vm229 = vcmask 125952
  %230 = vst.msk [vmem:[%s5] sm:$0xf] %vm229, %v213
  %231 = vst.msk [vmem:[%s5 + $0x4] sm:$0xf] %vm229, %v214
  %232 = vst.msk [vmem:[%s5 + $0x8] sm:$0xf] %vm229, %v215
  %233 = vst.msk [vmem:[%s5 + $0xc] sm:$0xf] %vm229, %v216
  %234 = vst.msk [vmem:[%s5 + $0x10] sm:$0xf] %vm229, %v217
  %235 = vst.msk [vmem:[%s5 + $0x14] sm:$0xf] %vm229, %v218
  %236 = vst.msk [vmem:[%s5 + $0x18] sm:$0xf] %vm229, %v219
  %237 = vst.msk [vmem:[%s5 + $0x1c] sm:$0xf] %vm229, %v220
  %238 = vst.msk [vmem:[%s5 + $0x20] sm:$0xf] %vm229, %v221
  %239 = vst.msk [vmem:[%s5 + $0x24] sm:$0xf] %vm229, %v222
  %240 = vst.msk [vmem:[%s5 + $0x28] sm:$0xf] %vm229, %v223
  %241 = vst.msk [vmem:[%s5 + $0x2c] sm:$0xf] %vm229, %v224
  %242 = vst.msk [vmem:[%s5 + $0x30] sm:$0xf] %vm229, %v225
  %243 = vst.msk [vmem:[%s5 + $0x34] sm:$0xf] %vm229, %v226
  %244 = vst.msk [vmem:[%s5 + $0x38] sm:$0xf] %vm229, %v227
  %245 = vst.msk [vmem:[%s5 + $0x3c] sm:$0xf] %vm229, %v228
  %vm246 = vcmask 130048
  %v247 = vsel %vm246, %v174, 0.0
  %v248 = vsel %vm246, %v176, 0.0
  %v249 = vadd.f32 %v247, %v248
  %v250 = vsel %vm246, %v179, 0.0
  %v251 = vadd.f32 %v249, %v250
  %v252 = vsel %vm246, %v181, 0.0
  %v253 = vadd.f32 %v251, %v252
  %v254 = vsel %vm246, %v184, 0.0
  %v255 = vadd.f32 %v253, %v254
  %v256 = vsel %vm246, %v186, 0.0
  %v257 = vadd.f32 %v255, %v256
  %v258 = vsel %vm246, %v189, 0.0
  %v259 = vadd.f32 %v257, %v258
  %v260 = vsel %vm246, %v191, 0.0
  %v261 = vadd.f32 %v259, %v260
  %v262 = vsel %vm246, %v194, 0.0
  %v263 = vadd.f32 %v261, %v262
  %v264 = vsel %vm246, %v196, 0.0
  %v265 = vadd.f32 %v263, %v264
  %v266 = vsel %vm246, %v199, 0.0
  %v267 = vadd.f32 %v265, %v266
  %v268 = vsel %vm246, %v201, 0.0
  %v269 = vadd.f32 %v267, %v268
  %v270 = vsel %vm246, %v204, 0.0
  %v271 = vadd.f32 %v269, %v270
  %v272 = vsel %vm246, %v206, 0.0
  %v273 = vadd.f32 %v271, %v272
  %v274 = vsel %vm246, %v209, 0.0
  %v275 = vadd.f32 %v273, %v274
  %v276 = vsel %vm246, %v211, 0.0
  %v277 = vadd.f32 %v275, %v276
  %v278 = vrot.slane %v277, 4
  %v279 = vadd.f32 %v277, %v278
  %v280 = vrot.slane %v279, 2
  %v281 = vadd.f32 %v279, %v280
  %v282 = vrot.slane %v281, 1
  %v283 = vadd.f32 %v281, %v282
  %v284 = vmul.f32 %v174, %v174
  %v285 = vmul.f32 %v176, %v176
  %v286 = vmul.f32 %v179, %v179
  %v287 = vmul.f32 %v181, %v181
  %v288 = vmul.f32 %v184, %v184
  %v289 = vmul.f32 %v186, %v186
  %v290 = vmul.f32 %v189, %v189
  %v291 = vmul.f32 %v191, %v191
  %v292 = vmul.f32 %v194, %v194
  %v293 = vmul.f32 %v196, %v196
  %v294 = vmul.f32 %v199, %v199
  %v295 = vmul.f32 %v201, %v201
  %v296 = vmul.f32 %v204, %v204
  %v297 = vmul.f32 %v206, %v206
  %v298 = vmul.f32 %v209, %v209
  %v299 = vmul.f32 %v211, %v211
  %v300 = vsel %vm246, %v284, 0.0
  %v301 = vsel %vm246, %v285, 0.0
  %v302 = vadd.f32 %v300, %v301
  %v303 = vsel %vm246, %v286, 0.0
  %v304 = vadd.f32 %v302, %v303
  %v305 = vsel %vm246, %v287, 0.0
  %v306 = vadd.f32 %v304, %v305
  %v307 = vsel %vm246, %v288, 0.0
  %v308 = vadd.f32 %v306, %v307
  %v309 = vsel %vm246, %v289, 0.0
  %v310 = vadd.f32 %v308, %v309
  %v311 = vsel %vm246, %v290, 0.0
  %v312 = vadd.f32 %v310, %v311
  %v313 = vsel %vm246, %v291, 0.0
  %v314 = vadd.f32 %v312, %v313
  %v315 = vsel %vm246, %v292, 0.0
  %v316 = vadd.f32 %v314, %v315
  %v317 = vsel %vm246, %v293, 0.0
  %v318 = vadd.f32 %v316, %v317
  %v319 = vsel %vm246, %v294, 0.0
  %v320 = vadd.f32 %v318, %v319
  %v321 = vsel %vm246, %v295, 0.0
  %v322 = vadd.f32 %v320, %v321
  %v323 = vsel %vm246, %v296, 0.0
  %v324 = vadd.f32 %v322, %v323
  %v325 = vsel %vm246, %v297, 0.0
  %v326 = vadd.f32 %v324, %v325
  %v327 = vsel %vm246, %v298, 0.0
  %v328 = vadd.f32 %v326, %v327
  %v329 = vsel %vm246, %v299, 0.0
  %v330 = vadd.f32 %v328, %v329
  %v331 = vrot.slane %v330, 4
  %v332 = vadd.f32 %v330, %v331
  %v333 = vrot.slane %v332, 2
  %v334 = vadd.f32 %v332, %v333
  %v335 = vrot.slane %v334, 1
  %v336 = vadd.f32 %v334, %v335
  %vm337 = vcmask 1040384
  %v338 = vsel %vm337, %v283, %v336
  %vm339 = vcmask 123904
  %340 = vst.msk [vmem:[%s6] sm:$0x3] %vm339, %v338
  // Predicated region
  $region22: #{pointnet_feature_propagation.4} parent=0 // pred_check
    _
  $region23: #{pointnet_feature_propagation.4} parent=0 // pred_check_branch
    %342 = sbr.rel (0) target = $region25
  $region24: #{pointnet_feature_propagation.4} parent=0 // pred_region
    _
  $region25: #{pointnet_feature_propagation.4} parent=0 // pred_fallthru
    _
  // Predicated region
  $region26: #{pointnet_feature_propagation.4} parent=0 // pred_check
    _
  $region27: #{pointnet_feature_propagation.4} parent=0 // pred_check_branch
    %344 = sbr.rel (0) target = $region29
  $region28: #{pointnet_feature_propagation.4} parent=0 // pred_region
    _
  $region29: #{pointnet_feature_propagation.4} parent=0 // pred_fallthru
    _
  // Predicated region
  $region30: #{pointnet_feature_propagation.4} parent=0 // pred_check
    _
  $region31: #{pointnet_feature_propagation.4} parent=0 // pred_check_branch
    %346 = sbr.rel (0) target = $region33
  $region32: #{pointnet_feature_propagation.4} parent=0 // pred_region
    _
  $region33: #{pointnet_feature_propagation.4} parent=0 // pred_fallthru
    _
  // Predicated region
  $region34: #{pointnet_feature_propagation.4} parent=0 // pred_check
    _
  $region35: #{pointnet_feature_propagation.4} parent=0 // pred_check_branch
    %348 = sbr.rel (0) target = $region37
  $region36: #{pointnet_feature_propagation.4} parent=0 // pred_region
    _
  $region37: #{pointnet_feature_propagation.4} parent=0 // pred_fallthru
    _

// kernel: pointnet_feature_propagation.3
$region0: #{pointnet_feature_propagation.3}
  #allocation0 [shape = 'u32[]', space=smem, size = 0x4, offset = 0x4, fixed_abs, tag = 'smem constant byte address 0x4 - core index']
  #allocation1 [shape = 'u32[72,128]{1,0:T(1,128)}', space=vmem, size = 0x9000, scoped, tag = 'internal scratch']
  %s0 = inlined_call_operand.vmem [shape: f32[2,64,3], index: 0, kind: input, shape index: {}]
  %s1 = inlined_call_operand.vmem [shape: f32[2,3,128], index: 1, kind: input, shape index: {}]
  %s2 = inlined_call_operand.vmem [shape: bf16[2,128,32], index: 2, kind: input, shape index: {}]
  %s3 = inlined_call_operand.vmem [shape: f32[2,64,8], index: 3, kind: input, shape index: {}]
  %s4 = inlined_call_operand.vmem [shape: bf16[8,32], index: 4, kind: input, shape index: {}]
  %s5 = inlined_call_operand.vmem [shape: f32[1,32], index: 5, kind: input, shape index: {}]
  %s6 = inlined_call_operand.vmem [shape: bf16[2,64,32], index: 6, kind: output, shape index: {0}]
  %s7 = inlined_call_operand.vmem [shape: f32[2,2,32], index: 7, kind: output, shape index: {1}]
  %8 = xla_tuple %s6, %s7
  %s9 = sld [smem:[#allocation0]]
  $region65: #{pointnet_feature_propagation.3} parent=0
    _
  %s11 = ssub.s32 1, %s9
  %s12 = scalar_select 0, %s11, %s9
  loop: start=0, step=1, limit=4
  $region2: #{pointnet_feature_propagation.3} parent=0 // loop_pre_header
    _
  $region3: #{pointnet_feature_propagation.3} parent=0 // loop_header
    %s14 = sphi 0, %s18
    %p15 = scmp.ge.s32.totalorder %s14, 4
    %s21 = sphi 0, %s33
    %s22 = sphi 0, %s29
    %s23 = sphi 0, %s21
    %s24 = sphi 0, %s22
    %s25 = sphi 0, %s23
    %s26 = sphi 0, %s24
    %s38 = sphi 0, %s40
    %s41 = sphi 0, %s38
    %s42 = sphi 0, %s41
    %s58 = sphi 0, %s42
    %s64 = sphi 0, %s66
    %s67 = sphi 0, %s64
    %s68 = sphi 0, %s67
    %s84 = sphi 0, %s68
    %s90 = sphi 0, %s92
    %s93 = sphi 0, %s90
    %s94 = sphi 0, %s93
    %s110 = sphi 0, %s94
    %s118 = sphi 0, %s120
    %s121 = sphi 0, %s118
    %s122 = sphi 0, %s121
    %s138 = sphi 0, %s122
    %s142 = sphi 0, %s142
    %s144 = sphi 0, %s142
    %s145 = sphi 0, %s144
    %s159 = sphi 0, %s145
    %s163 = sphi 0, %s163
    %s165 = sphi 0, %s163
    %s166 = sphi 0, %s165
    %s180 = sphi 0, %s166
    %s188 = sphi 0, %s190
    %s191 = sphi 0, %s188
    %s192 = sphi 0, %s191
    %s208 = sphi 0, %s192
    %s216 = sphi 0, %s218
    %s219 = sphi 0, %s216
    %s220 = sphi 0, %s219
    %s236 = sphi 0, %s220
  $region4: #{pointnet_feature_propagation.3} parent=0 // loop_header_branch
    %17 = sbr.rel (%p15) target = $region8
  $region5: #{pointnet_feature_propagation.3} parent=0 // loop_body
    %s19 = ssub.s32 %s14, 1
    %s20 = ssub.s32 %s14, 2
    %s27 = sadd.s32 1, %s22
    %p28 = scmp.ge.s32.totalorder %s27, 1
    %s29 = scalar_select %p28, 0, %s27
    %s30 = sadd.s32 1, %s21
    %s31 = scalar_select %p28, %s30, %s21
    %p32 = scmp.ge.s32.totalorder %s31, 2
    %s33 = scalar_select %p32, 0, %s31
    %s34 = ssub.s32 %s21, %s33
    %s35 = ssub.s32 %s22, %s29
    %s36 = sor.u32 %s34, %s35
    %p37 = scmp.eq.s32.totalorder %s36, 0
    %s39 = sadd.s32 %s38, 1
    %s40 = scalar_select %p37, %s38, %s39
    %p43 = pneg %p37
    %p44 = scmp.eq.s32.totalorder %s14, 1
    %p45 = por %p43, %p44
    %p46 = scmp.ne.s32.totalorder %s38, %s41
    %p47 = scmp.eq.s32.totalorder %s14, 0
    %p48 = por %p46, %p47
    %p49 = scmp.ne.s32.totalorder %s38, %s41
    %p50 = scmp.eq.s32.totalorder %s19, 1
    %p51 = por %p49, %p50
    %p52 = scmp.ne.s32.totalorder %s41, %s42
    %p53 = scmp.eq.s32.totalorder %s19, 0
    %p54 = por %p52, %p53
    %p55 = scmp.ne.s32.totalorder %s41, %s42
    %p56 = scmp.eq.s32.totalorder %s20, 1
    %p57 = por %p55, %p56
    %p59 = scmp.ne.s32.totalorder %s42, %s58
    %p60 = scmp.eq.s32.totalorder %s20, 0
    %p61 = por %p59, %p60
    %s62 = ssub.s32 %s21, %s33
    %p63 = scmp.eq.s32.totalorder %s62, 0
    %s65 = sadd.s32 %s64, 1
    %s66 = scalar_select %p63, %s64, %s65
    %p69 = pneg %p63
    %p70 = scmp.eq.s32.totalorder %s14, 1
    %p71 = por %p69, %p70
    %p72 = scmp.ne.s32.totalorder %s64, %s67
    %p73 = scmp.eq.s32.totalorder %s14, 0
    %p74 = por %p72, %p73
    %p75 = scmp.ne.s32.totalorder %s64, %s67
    %p76 = scmp.eq.s32.totalorder %s19, 1
    %p77 = por %p75, %p76
    %p78 = scmp.ne.s32.totalorder %s67, %s68
    %p79 = scmp.eq.s32.totalorder %s19, 0
    %p80 = por %p78, %p79
    %p81 = scmp.ne.s32.totalorder %s67, %s68
    %p82 = scmp.eq.s32.totalorder %s20, 1
    %p83 = por %p81, %p82
    %p85 = scmp.ne.s32.totalorder %s68, %s84
    %p86 = scmp.eq.s32.totalorder %s20, 0
    %p87 = por %p85, %p86
    %s88 = ssub.s32 %s21, %s33
    %p89 = scmp.eq.s32.totalorder %s88, 0
    %s91 = sadd.s32 %s90, 1
    %s92 = scalar_select %p89, %s90, %s91
    %p95 = pneg %p89
    %p96 = scmp.eq.s32.totalorder %s14, 1
    %p97 = por %p95, %p96
    %p98 = scmp.ne.s32.totalorder %s90, %s93
    %p99 = scmp.eq.s32.totalorder %s14, 0
    %p100 = por %p98, %p99
    %p101 = scmp.ne.s32.totalorder %s90, %s93
    %p102 = scmp.eq.s32.totalorder %s19, 1
    %p103 = por %p101, %p102
    %p104 = scmp.ne.s32.totalorder %s93, %s94
    %p105 = scmp.eq.s32.totalorder %s19, 0
    %p106 = por %p104, %p105
    %p107 = scmp.ne.s32.totalorder %s93, %s94
    %p108 = scmp.eq.s32.totalorder %s20, 1
    %p109 = por %p107, %p108
    %p111 = scmp.ne.s32.totalorder %s94, %s110
    %p112 = scmp.eq.s32.totalorder %s20, 0
    %p113 = por %p111, %p112
    %s114 = ssub.s32 %s21, %s33
    %s115 = ssub.s32 %s22, %s29
    %s116 = sor.u32 %s114, %s115
    %p117 = scmp.eq.s32.totalorder %s116, 0
    %s119 = sadd.s32 %s118, 1
    %s120 = scalar_select %p117, %s118, %s119
    %p123 = pneg %p117
    %p124 = scmp.eq.s32.totalorder %s14, 1
    %p125 = por %p123, %p124
    %p126 = scmp.ne.s32.totalorder %s118, %s121
    %p127 = scmp.eq.s32.totalorder %s14, 0
    %p128 = por %p126, %p127
    %p129 = scmp.ne.s32.totalorder %s118, %s121
    %p130 = scmp.eq.s32.totalorder %s19, 1
    %p131 = por %p129, %p130
    %p132 = scmp.ne.s32.totalorder %s121, %s122
    %p133 = scmp.eq.s32.totalorder %s19, 0
    %p134 = por %p132, %p133
    %p135 = scmp.ne.s32.totalorder %s121, %s122
    %p136 = scmp.eq.s32.totalorder %s20, 1
    %p137 = por %p135, %p136
    %p139 = scmp.ne.s32.totalorder %s122, %s138
    %p140 = scmp.eq.s32.totalorder %s20, 0
    %p141 = por %p139, %p140
    %s143 = sadd.s32 %s142, 1
    %p146 = scmp.eq.s32.totalorder %s14, 1
    %p147 = scmp.ne.s32.totalorder %s142, %s144
    %p148 = scmp.eq.s32.totalorder %s14, 0
    %p149 = por %p147, %p148
    %p150 = scmp.ne.s32.totalorder %s142, %s144
    %p151 = scmp.eq.s32.totalorder %s19, 1
    %p152 = por %p150, %p151
    %p153 = scmp.ne.s32.totalorder %s144, %s145
    %p154 = scmp.eq.s32.totalorder %s19, 0
    %p155 = por %p153, %p154
    %p156 = scmp.ne.s32.totalorder %s144, %s145
    %p157 = scmp.eq.s32.totalorder %s20, 1
    %p158 = por %p156, %p157
    %p160 = scmp.ne.s32.totalorder %s145, %s159
    %p161 = scmp.eq.s32.totalorder %s20, 0
    %p162 = por %p160, %p161
    %s164 = sadd.s32 %s163, 1
    %p167 = scmp.eq.s32.totalorder %s14, 1
    %p168 = scmp.ne.s32.totalorder %s163, %s165
    %p169 = scmp.eq.s32.totalorder %s14, 0
    %p170 = por %p168, %p169
    %p171 = scmp.ne.s32.totalorder %s163, %s165
    %p172 = scmp.eq.s32.totalorder %s19, 1
    %p173 = por %p171, %p172
    %p174 = scmp.ne.s32.totalorder %s165, %s166
    %p175 = scmp.eq.s32.totalorder %s19, 0
    %p176 = por %p174, %p175
    %p177 = scmp.ne.s32.totalorder %s165, %s166
    %p178 = scmp.eq.s32.totalorder %s20, 1
    %p179 = por %p177, %p178
    %p181 = scmp.ne.s32.totalorder %s166, %s180
    %p182 = scmp.eq.s32.totalorder %s20, 0
    %p183 = por %p181, %p182
    %s184 = ssub.s32 %s21, %s33
    %s185 = ssub.s32 %s22, %s29
    %s186 = sor.u32 %s184, %s185
    %p187 = scmp.eq.s32.totalorder %s186, 0
    %s189 = sadd.s32 %s188, 1
    %s190 = scalar_select %p187, %s188, %s189
    %p193 = pneg %p187
    %p194 = scmp.eq.s32.totalorder %s14, 1
    %p195 = por %p193, %p194
    %p196 = scmp.ne.s32.totalorder %s188, %s191
    %p197 = scmp.eq.s32.totalorder %s14, 0
    %p198 = por %p196, %p197
    %p199 = scmp.ne.s32.totalorder %s188, %s191
    %p200 = scmp.eq.s32.totalorder %s19, 1
    %p201 = por %p199, %p200
    %p202 = scmp.ne.s32.totalorder %s191, %s192
    %p203 = scmp.eq.s32.totalorder %s19, 0
    %p204 = por %p202, %p203
    %p205 = scmp.ne.s32.totalorder %s191, %s192
    %p206 = scmp.eq.s32.totalorder %s20, 1
    %p207 = por %p205, %p206
    %p209 = scmp.ne.s32.totalorder %s192, %s208
    %p210 = scmp.eq.s32.totalorder %s20, 0
    %p211 = por %p209, %p210
    %s212 = sadd.s32 %s21, %s22
    %s213 = sadd.s32 %s33, %s29
    %s214 = ssub.s32 %s212, %s213
    %p215 = scmp.eq.s32.totalorder %s214, 0
    %s217 = sadd.s32 %s216, 1
    %s218 = scalar_select %p215, %s216, %s217
    %p221 = pneg %p215
    %p222 = scmp.eq.s32.totalorder %s14, 1
    %p223 = por %p221, %p222
    %p224 = scmp.ne.s32.totalorder %s216, %s219
    %p225 = scmp.eq.s32.totalorder %s14, 0
    %p226 = por %p224, %p225
    %p227 = scmp.ne.s32.totalorder %s216, %s219
    %p228 = scmp.eq.s32.totalorder %s19, 1
    %p229 = por %p227, %p228
    %p230 = scmp.ne.s32.totalorder %s219, %s220
    %p231 = scmp.eq.s32.totalorder %s19, 0
    %p232 = por %p230, %p231
    %p233 = scmp.ne.s32.totalorder %s219, %s220
    %p234 = scmp.eq.s32.totalorder %s20, 1
    %p235 = por %p233, %p234
    %p237 = scmp.ne.s32.totalorder %s220, %s236
    %p238 = scmp.eq.s32.totalorder %s20, 0
    %p239 = por %p237, %p238
    %p240 = scmp.le.s32.totalorder 1, %s14
    %p241 = scmp.lt.s32.totalorder %s14, 3
    %p242 = pnand %p240, %p241
    %p243 = pneg %p242
    // Predicated region
    $region9: #{pointnet_feature_propagation.3} parent=5 // pred_check
      _
    $region10: #{pointnet_feature_propagation.3} parent=5 // pred_check_branch
      %245 = sbr.rel (%p242) target = $region12
    $region11: #{pointnet_feature_propagation.3} parent=5 // pred_region
      %s246 = ssub.s32 %s14, 1
      // Predicated region
      $region13: #{pointnet_feature_propagation.3} parent=11 // pred_check
        %p247 = pneg %p155
      $region14: #{pointnet_feature_propagation.3} parent=11 // pred_check_branch
        %249 = sbr.rel (%p247) target = $region16
      $region15: #{pointnet_feature_propagation.3} parent=11 // pred_region
        _
      $region16: #{pointnet_feature_propagation.3} parent=11 // pred_fallthru
        _
      // Predicated region
      $region17: #{pointnet_feature_propagation.3} parent=11 // pred_check
        %p250 = pneg %p176
      $region18: #{pointnet_feature_propagation.3} parent=11 // pred_check_branch
        %252 = sbr.rel (%p250) target = $region20
      $region19: #{pointnet_feature_propagation.3} parent=11 // pred_region
        _
      $region20: #{pointnet_feature_propagation.3} parent=11 // pred_fallthru
        _
    $region12: #{pointnet_feature_propagation.3} parent=5 // pred_fallthru
      _
    %p253 = scmp.lt.s32.totalorder %s14, 2
    // Predicated region
    $region21: #{pointnet_feature_propagation.3} parent=5 // pred_check
      %p254 = pneg %p253
    $region22: #{pointnet_feature_propagation.3} parent=5 // pred_check_branch
      %256 = sbr.rel (%p254) target = $region24
    $region23: #{pointnet_feature_propagation.3} parent=5 // pred_region
      // Predicated region
      $region25: #{pointnet_feature_propagation.3} parent=23 // pred_check
        %p257 = pneg %p48
      $region26: #{pointnet_feature_propagation.3} parent=23 // pred_check_branch
        %259 = sbr.rel (%p257) target = $region28
      $region27: #{pointnet_feature_propagation.3} parent=23 // pred_region
        %s260 = smul.u32 8, %s22
        %p261 = scmp.lt.s32.totalorder %s21, 1
        %s262 = scalar_select %p261, %s21, 1
        %p263 = scmp.lt.s32.totalorder %s260, 7
        %s264 = scalar_select %p263, %s260, 7
        %s265 = smul.addr %s262, 8
        %s266 = sadd.s32 %s264, %s265
        %s267 = smul.addr %s266, 8
        %s268 = scalar_lea.vmem %s0, %s267
        %s269 = smul.u32 8, %s22
      $region28: #{pointnet_feature_propagation.3} parent=23 // pred_fallthru
        _
      // Predicated region
      $region29: #{pointnet_feature_propagation.3} parent=23 // pred_check
        %p270 = pneg %p74
      $region30: #{pointnet_feature_propagation.3} parent=23 // pred_check_branch
        %272 = sbr.rel (%p270) target = $region32
      $region31: #{pointnet_feature_propagation.3} parent=23 // pred_region
        %p273 = scmp.lt.s32.totalorder %s21, 1
        %s274 = scalar_select %p273, %s21, 1
        %s275 = smul.addr %s274, 4
        %s276 = scalar_lea.vmem %s1, %s275
      $region32: #{pointnet_feature_propagation.3} parent=23 // pred_fallthru
        _
      // Predicated region
      $region33: #{pointnet_feature_propagation.3} parent=23 // pred_check
        %p277 = pneg %p100
      $region34: #{pointnet_feature_propagation.3} parent=23 // pred_check_branch
        %279 = sbr.rel (%p277) target = $region36
      $region35: #{pointnet_feature_propagation.3} parent=23 // pred_region
        %p280 = scmp.lt.s32.totalorder %s21, 1
        %s281 = scalar_select %p280, %s21, 1
        %s282 = smul.addr %s281, 16
        %s283 = smul.addr %s282, 4
        %s284 = scalar_lea.vmem %s2, %s283
      $region36: #{pointnet_feature_propagation.3} parent=23 // pred_fallthru
        _
      // Predicated region
      $region37: #{pointnet_feature_propagation.3} parent=23 // pred_check
        %p285 = pneg %p128
      $region38: #{pointnet_feature_propagation.3} parent=23 // pred_check_branch
        %287 = sbr.rel (%p285) target = $region40
      $region39: #{pointnet_feature_propagation.3} parent=23 // pred_region
        %s288 = smul.u32 8, %s22
        %p289 = scmp.lt.s32.totalorder %s21, 1
        %s290 = scalar_select %p289, %s21, 1
        %p291 = scmp.lt.s32.totalorder %s288, 7
        %s292 = scalar_select %p291, %s288, 7
        %s293 = smul.addr %s290, 8
        %s294 = sadd.s32 %s292, %s293
        %s295 = smul.addr %s294, 8
        %s296 = scalar_lea.vmem %s3, %s295
        %s297 = smul.u32 8, %s22
      $region40: #{pointnet_feature_propagation.3} parent=23 // pred_fallthru
        _
    $region24: #{pointnet_feature_propagation.3} parent=5 // pred_fallthru
      _
    %p298 = scmp.le.s32.totalorder 1, %s14
    %p299 = scmp.lt.s32.totalorder %s14, 3
    %p300 = pnand %p298, %p299
    %p301 = pneg %p300
    // Predicated region
    $region41: #{pointnet_feature_propagation.3} parent=5 // pred_check
      _
    $region42: #{pointnet_feature_propagation.3} parent=5 // pred_check_branch
      %303 = sbr.rel (%p300) target = $region44
    $region43: #{pointnet_feature_propagation.3} parent=5 // pred_region
      %s304 = ssub.s32 %s14, 1
      %s305 = smul.u32 8, %s24
      %p306 = scmp.lt.s32.totalorder %s23, 1
      %s307 = scalar_select %p306, %s23, 1
      %p308 = scmp.lt.s32.totalorder %s305, 7
      %s309 = scalar_select %p308, %s305, 7
      %s310 = smul.addr %s307, 8
      %s311 = sadd.s32 %s309, %s310
      %s312 = smul.addr %s311, 8
      %s313 = scalar_lea.vmem %s0, %s312
      %p314 = pneg %p54
      %p315 = pneg %p51
      %p316 = scmp.lt.s32.totalorder %s23, 1
      %s317 = scalar_select %p316, %s23, 1
      %s318 = smul.addr %s317, 4
      %s319 = scalar_lea.vmem %s1, %s318
      %p320 = pneg %p80
      %p321 = pneg %p77
      %p322 = scmp.lt.s32.totalorder %s23, 1
      %s323 = scalar_select %p322, %s23, 1
      %s324 = smul.addr %s323, 16
      %s325 = smul.addr %s324, 4
      %s326 = scalar_lea.vmem %s2, %s325
      %p327 = pneg %p106
      %p328 = pneg %p103
      %s329 = smul.u32 8, %s24
      %p330 = scmp.lt.s32.totalorder %s23, 1
      %s331 = scalar_select %p330, %s23, 1
      %p332 = scmp.lt.s32.totalorder %s329, 7
      %s333 = scalar_select %p332, %s329, 7
      %s334 = smul.addr %s331, 8
      %s335 = sadd.s32 %s333, %s334
      %s336 = smul.addr %s335, 8
      %s337 = scalar_lea.vmem %s3, %s336
      %p338 = pneg %p134
      %p339 = pneg %p131
      %p340 = pneg %p155
      %p341 = pneg %p152
      %p342 = pneg %p176
      %p343 = pneg %p173
      %p344 = pneg %p204
      %p345 = pneg %p201
      %s346 = smul.u32 8, %s24
      %p347 = scmp.lt.s32.totalorder %s23, 1
      %s348 = scalar_select %p347, %s23, 1
      %p349 = scmp.lt.s32.totalorder %s346, 7
      %s350 = scalar_select %p349, %s346, 7
      %s351 = smul.addr %s348, 8
      %s352 = sadd.s32 %s350, %s351
      %s353 = smul.addr %s352, 4
      %s354 = scalar_lea.vmem %s6, %s353
      %p355 = pneg %p232
      %p356 = pneg %p229
      %s357 = sadd.s32 %s23, %s24
      %p358 = scmp.lt.s32.totalorder %s357, 1
      %s359 = scalar_select %p358, %s357, 1
      %s360 = smul.addr %s359, 2
      %s361 = scalar_lea.vmem %s7, %s360
      %s362 = smul.u32 8, %s24
      %p363 = scmp.lt.s32.totalorder %s23, 1
      %s364 = scalar_select %p363, %s23, 1
      %p365 = scmp.lt.s32.totalorder %s362, 7
      %s366 = scalar_select %p365, %s362, 7
      %s367 = smul.addr %s364, 8
      %s368 = sadd.s32 %s366, %s367
      %s369 = smul.addr %s368, 8
      %s370 = scalar_lea.vmem %s0, %s369
      %s371 = smul.u32 8, %s24
      %p372 = scmp.lt.s32.totalorder %s23, 1
      %s373 = scalar_select %p372, %s23, 1
      %s374 = smul.addr %s373, 4
      %s375 = scalar_lea.vmem %s1, %s374
      %p376 = scmp.lt.s32.totalorder %s23, 1
      %s377 = scalar_select %p376, %s23, 1
      %s378 = smul.addr %s377, 16
      %s379 = smul.addr %s378, 4
      %s380 = scalar_lea.vmem %s2, %s379
      %s381 = smul.u32 8, %s24
      %p382 = scmp.lt.s32.totalorder %s23, 1
      %s383 = scalar_select %p382, %s23, 1
      %p384 = scmp.lt.s32.totalorder %s381, 7
      %s385 = scalar_select %p384, %s381, 7
      %s386 = smul.addr %s383, 8
      %s387 = sadd.s32 %s385, %s386
      %s388 = smul.addr %s387, 8
      %s389 = scalar_lea.vmem %s3, %s388
      %s390 = smul.u32 8, %s24
      %s391 = smul.u32 8, %s24
      %p392 = scmp.lt.s32.totalorder %s23, 1
      %s393 = scalar_select %p392, %s23, 1
      %p394 = scmp.lt.s32.totalorder %s391, 7
      %s395 = scalar_select %p394, %s391, 7
      %s396 = smul.addr %s393, 8
      %s397 = sadd.s32 %s395, %s396
      %s398 = smul.addr %s397, 4
      %s399 = scalar_lea.vmem %s6, %s398
      %s400 = smul.u32 8, %s24
      %s401 = sadd.s32 %s23, %s24
      %p402 = scmp.lt.s32.totalorder %s401, 1
      %s403 = scalar_select %p402, %s401, 1
      %s404 = smul.addr %s403, 2
      %s405 = scalar_lea.vmem %s7, %s404
      %s406 = sadd.s32 %s23, %s24
      %v408 = vld [vmem:[%s370] sm:$0xff]
      %v409 = vld [vmem:[%s370 + $0x8] sm:$0xff]
      %v410 = vld [vmem:[%s370 + $0x10] sm:$0xff]
      %v411 = vld [vmem:[%s370 + $0x18] sm:$0xff]
      %v412 = vld [vmem:[%s370 + $0x20] sm:$0xff]
      %v413 = vld [vmem:[%s370 + $0x28] sm:$0xff]
      %v414 = vld [vmem:[%s370 + $0x30] sm:$0xff]
      %v415 = vld [vmem:[%s370 + $0x38] sm:$0xff]
      %v416 = vld [vmem:[%s375] sm:$0x7]
      %418 = vset.pattern.permute.xlu0 0
      %419 = vperm.xlu0 %418, %v408
      %v420 = vpop.permute.xlu0 %419
      %423 = vset.pattern.permute.xlu0 0
      %424 = vperm.xlu0 %423, %v409
      %v425 = vpop.permute.xlu0 %424
      %428 = vset.pattern.permute.xlu0 0
      %429 = vperm.xlu0 %428, %v410
      %v430 = vpop.permute.xlu0 %429
      %433 = vset.pattern.permute.xlu0 0
      %434 = vperm.xlu0 %433, %v411
      %v435 = vpop.permute.xlu0 %434
      %438 = vset.pattern.permute.xlu0 0
      %439 = vperm.xlu0 %438, %v412
      %v440 = vpop.permute.xlu0 %439
      %443 = vset.pattern.permute.xlu0 0
      %444 = vperm.xlu0 %443, %v413
      %v445 = vpop.permute.xlu0 %444
      %448 = vset.pattern.permute.xlu0 0
      %449 = vperm.xlu0 %448, %v414
      %v450 = vpop.permute.xlu0 %449
      %453 = vset.pattern.permute.xlu0 0
      %454 = vperm.xlu0 %453, %v415
      %v455 = vpop.permute.xlu0 %454
      %v457 = vperm.slane %v416, 0
      %v458 = vsub.f32 %v420, %v457
      %v459 = vsub.f32 %v425, %v457
      %v460 = vsub.f32 %v430, %v457
      %v461 = vsub.f32 %v435, %v457
      %v462 = vsub.f32 %v440, %v457
      %v463 = vsub.f32 %v445, %v457
      %v464 = vsub.f32 %v450, %v457
      %v465 = vsub.f32 %v455, %v457
      %v466 = vmul.f32 %v458, %v458
      %v467 = vmul.f32 %v459, %v459
      %v468 = vmul.f32 %v460, %v460
      %v469 = vmul.f32 %v461, %v461
      %v470 = vmul.f32 %v462, %v462
      %v471 = vmul.f32 %v463, %v463
      %v472 = vmul.f32 %v464, %v464
      %v473 = vmul.f32 %v465, %v465
      %474 = vset.pattern.permute.xlu0 1
      %475 = vperm.xlu0 %474, %v408
      %v476 = vpop.permute.xlu0 %475
      %478 = vset.pattern.permute.xlu0 1
      %479 = vperm.xlu0 %478, %v409
      %v480 = vpop.permute.xlu0 %479
      %482 = vset.pattern.permute.xlu0 1
      %483 = vperm.xlu0 %482, %v410
      %v484 = vpop.permute.xlu0 %483
      %486 = vset.pattern.permute.xlu0 1
      %487 = vperm.xlu0 %486, %v411
      %v488 = vpop.permute.xlu0 %487
      %490 = vset.pattern.permute.xlu0 1
      %491 = vperm.xlu0 %490, %v412
      %v492 = vpop.permute.xlu0 %491
      %494 = vset.pattern.permute.xlu0 1
      %495 = vperm.xlu0 %494, %v413
      %v496 = vpop.permute.xlu0 %495
      %498 = vset.pattern.permute.xlu0 1
      %499 = vperm.xlu0 %498, %v414
      %v500 = vpop.permute.xlu0 %499
      %502 = vset.pattern.permute.xlu0 1
      %503 = vperm.xlu0 %502, %v415
      %v504 = vpop.permute.xlu0 %503
      %v506 = vperm.slane %v416, 1
      %v507 = vsub.f32 %v476, %v506
      %v508 = vsub.f32 %v480, %v506
      %v509 = vsub.f32 %v484, %v506
      %v510 = vsub.f32 %v488, %v506
      %v511 = vsub.f32 %v492, %v506
      %v512 = vsub.f32 %v496, %v506
      %v513 = vsub.f32 %v500, %v506
      %v514 = vsub.f32 %v504, %v506
      %v515 = vmul.f32 %v507, %v507
      %v516 = vmul.f32 %v508, %v508
      %v517 = vmul.f32 %v509, %v509
      %v518 = vmul.f32 %v510, %v510
      %v519 = vmul.f32 %v511, %v511
      %v520 = vmul.f32 %v512, %v512
      %v521 = vmul.f32 %v513, %v513
      %v522 = vmul.f32 %v514, %v514
      %v523 = vadd.f32 %v466, %v515
      %v524 = vadd.f32 %v467, %v516
      %v525 = vadd.f32 %v468, %v517
      %v526 = vadd.f32 %v469, %v518
      %v527 = vadd.f32 %v470, %v519
      %v528 = vadd.f32 %v471, %v520
      %v529 = vadd.f32 %v472, %v521
      %v530 = vadd.f32 %v473, %v522
      %531 = vset.pattern.permute.xlu0 2
      %532 = vperm.xlu0 %531, %v408
      %v533 = vpop.permute.xlu0 %532
      %535 = vset.pattern.permute.xlu0 2
      %536 = vperm.xlu0 %535, %v409
      %v537 = vpop.permute.xlu0 %536
      %539 = vset.pattern.permute.xlu0 2
      %540 = vperm.xlu0 %539, %v410
      %v541 = vpop.permute.xlu0 %540
      %543 = vset.pattern.permute.xlu0 2
      %544 = vperm.xlu0 %543, %v411
      %v545 = vpop.permute.xlu0 %544
      %547 = vset.pattern.permute.xlu0 2
      %548 = vperm.xlu0 %547, %v412
      %v549 = vpop.permute.xlu0 %548
      %551 = vset.pattern.permute.xlu0 2
      %552 = vperm.xlu0 %551, %v413
      %v553 = vpop.permute.xlu0 %552
      %555 = vset.pattern.permute.xlu0 2
      %556 = vperm.xlu0 %555, %v414
      %v557 = vpop.permute.xlu0 %556
      %559 = vset.pattern.permute.xlu0 2
      %560 = vperm.xlu0 %559, %v415
      %v561 = vpop.permute.xlu0 %560
      %v563 = vperm.slane %v416, 2
      %v564 = vsub.f32 %v533, %v563
      %v565 = vsub.f32 %v537, %v563
      %v566 = vsub.f32 %v541, %v563
      %v567 = vsub.f32 %v545, %v563
      %v568 = vsub.f32 %v549, %v563
      %v569 = vsub.f32 %v553, %v563
      %v570 = vsub.f32 %v557, %v563
      %v571 = vsub.f32 %v561, %v563
      %v572 = vmul.f32 %v564, %v564
      %v573 = vmul.f32 %v565, %v565
      %v574 = vmul.f32 %v566, %v566
      %v575 = vmul.f32 %v567, %v567
      %v576 = vmul.f32 %v568, %v568
      %v577 = vmul.f32 %v569, %v569
      %v578 = vmul.f32 %v570, %v570
      %v579 = vmul.f32 %v571, %v571
      %v580 = vadd.f32 %v523, %v572
      %v581 = vadd.f32 %v524, %v573
      %v582 = vadd.f32 %v525, %v574
      %v583 = vadd.f32 %v526, %v575
      %v584 = vadd.f32 %v527, %v576
      %v585 = vadd.f32 %v528, %v577
      %v586 = vadd.f32 %v529, %v578
      %v587 = vadd.f32 %v530, %v579
      %v588 = vlaneseq
      %v589 = vand.u32 %v588, 127
      %590 = vmin.xlane.f32.xlu0 %v580
      %v591 = vpop.xlane.xlu0 %590
      %592 = vmin.xlane.f32.xlu0 %v581
      %v593 = vpop.xlane.xlu0 %592
      %594 = vmin.xlane.f32.xlu0 %v582
      %v595 = vpop.xlane.xlu0 %594
      %596 = vmin.xlane.f32.xlu0 %v583
      %v597 = vpop.xlane.xlu0 %596
      %598 = vmin.xlane.f32.xlu0 %v584
      %v599 = vpop.xlane.xlu0 %598
      %600 = vmin.xlane.f32.xlu0 %v585
      %v601 = vpop.xlane.xlu0 %600
      %602 = vmin.xlane.f32.xlu0 %v586
      %v603 = vpop.xlane.xlu0 %602
      %604 = vmin.xlane.f32.xlu0 %v587
      %v605 = vpop.xlane.xlu0 %604
      %vm606 = vcmp.eq.f32.partialorder %v580, %v591
      %vm607 = vcmp.eq.f32.partialorder %v581, %v593
      %vm608 = vcmp.eq.f32.partialorder %v582, %v595
      %vm609 = vcmp.eq.f32.partialorder %v583, %v597
      %vm610 = vcmp.eq.f32.partialorder %v584, %v599
      %vm611 = vcmp.eq.f32.partialorder %v585, %v601
      %vm612 = vcmp.eq.f32.partialorder %v586, %v603
      %vm613 = vcmp.eq.f32.partialorder %v587, %v605
      %v614 = vsel %vm606, %v589, 128
      %v615 = vsel %vm607, %v589, 128
      %v616 = vsel %vm608, %v589, 128
      %v617 = vsel %vm609, %v589, 128
      %v618 = vsel %vm610, %v589, 128
      %v619 = vsel %vm611, %v589, 128
      %v620 = vsel %vm612, %v589, 128
      %v621 = vsel %vm613, %v589, 128
      %v622 = vand.u32 %v614, 65535
      %v623 = vshra.s32 %v614, 16
      %v624 = vcvt.s32.f32 %v622
      %v625 = vcvt.s32.f32 %v623
      %626 = vmin.xlane.f32.xlu0 %v625
      %v627 = vpop.xlane.xlu0 %626
      %vm628 = vcmp.eq.f32.partialorder %v625, %v627
      %v629 = vsel %vm628, %v624, inf
      %630 = vmin.xlane.f32.xlu0 %v629
      %v631 = vpop.xlane.xlu0 %630
      %v632 = vcvt.f32.s32 %v631
      %v633 = vcvt.f32.s32 %v627
      %v634 = vshll.u32 %v633, 16
      %v635 = vadd.s32 %v634, %v632
      %v636 = vand.u32 %v615, 65535
      %v637 = vshra.s32 %v615, 16
      %v638 = vcvt.s32.f32 %v636
      %v639 = vcvt.s32.f32 %v637
      %640 = vmin.xlane.f32.xlu0 %v639
      %v641 = vpop.xlane.xlu0 %640
      %vm642 = vcmp.eq.f32.partialorder %v639, %v641
      %v643 = vsel %vm642, %v638, inf
      %644 = vmin.xlane.f32.xlu0 %v643
      %v645 = vpop.xlane.xlu0 %644
      %v646 = vcvt.f32.s32 %v645
      %v647 = vcvt.f32.s32 %v641
      %v648 = vshll.u32 %v647, 16
      %v649 = vadd.s32 %v648, %v646
      %v650 = vand.u32 %v616, 65535
      %v651 = vshra.s32 %v616, 16
      %v652 = vcvt.s32.f32 %v650
      %v653 = vcvt.s32.f32 %v651
      %654 = vmin.xlane.f32.xlu0 %v653
      %v655 = vpop.xlane.xlu0 %654
      %vm656 = vcmp.eq.f32.partialorder %v653, %v655
      %v657 = vsel %vm656, %v652, inf
      %658 = vmin.xlane.f32.xlu0 %v657
      %v659 = vpop.xlane.xlu0 %658
      %v660 = vcvt.f32.s32 %v659
      %v661 = vcvt.f32.s32 %v655
      %v662 = vshll.u32 %v661, 16
      %v663 = vadd.s32 %v662, %v660
      %v664 = vand.u32 %v617, 65535
      %v665 = vshra.s32 %v617, 16
      %v666 = vcvt.s32.f32 %v664
      %v667 = vcvt.s32.f32 %v665
      %668 = vmin.xlane.f32.xlu0 %v667
      %v669 = vpop.xlane.xlu0 %668
      %vm670 = vcmp.eq.f32.partialorder %v667, %v669
      %v671 = vsel %vm670, %v666, inf
      %672 = vmin.xlane.f32.xlu0 %v671
      %v673 = vpop.xlane.xlu0 %672
      %v674 = vcvt.f32.s32 %v673
      %v675 = vcvt.f32.s32 %v669
      %v676 = vshll.u32 %v675, 16
      %v677 = vadd.s32 %v676, %v674
      %v678 = vand.u32 %v618, 65535
      %v679 = vshra.s32 %v618, 16
      %v680 = vcvt.s32.f32 %v678
      %v681 = vcvt.s32.f32 %v679
      %682 = vmin.xlane.f32.xlu0 %v681
      %v683 = vpop.xlane.xlu0 %682
      %vm684 = vcmp.eq.f32.partialorder %v681, %v683
      %v685 = vsel %vm684, %v680, inf
      %686 = vmin.xlane.f32.xlu0 %v685
      %v687 = vpop.xlane.xlu0 %686
      %v688 = vcvt.f32.s32 %v687
      %v689 = vcvt.f32.s32 %v683
      %v690 = vshll.u32 %v689, 16
      %v691 = vadd.s32 %v690, %v688
      %v692 = vand.u32 %v619, 65535
      %v693 = vshra.s32 %v619, 16
      %v694 = vcvt.s32.f32 %v692
      %v695 = vcvt.s32.f32 %v693
      %696 = vmin.xlane.f32.xlu0 %v695
      %v697 = vpop.xlane.xlu0 %696
      %vm698 = vcmp.eq.f32.partialorder %v695, %v697
      %v699 = vsel %vm698, %v694, inf
      %700 = vmin.xlane.f32.xlu0 %v699
      %v701 = vpop.xlane.xlu0 %700
      %v702 = vcvt.f32.s32 %v701
      %v703 = vcvt.f32.s32 %v697
      %v704 = vshll.u32 %v703, 16
      %v705 = vadd.s32 %v704, %v702
      %v706 = vand.u32 %v620, 65535
      %v707 = vshra.s32 %v620, 16
      %v708 = vcvt.s32.f32 %v706
      %v709 = vcvt.s32.f32 %v707
      %710 = vmin.xlane.f32.xlu0 %v709
      %v711 = vpop.xlane.xlu0 %710
      %vm712 = vcmp.eq.f32.partialorder %v709, %v711
      %v713 = vsel %vm712, %v708, inf
      %714 = vmin.xlane.f32.xlu0 %v713
      %v715 = vpop.xlane.xlu0 %714
      %v716 = vcvt.f32.s32 %v715
      %v717 = vcvt.f32.s32 %v711
      %v718 = vshll.u32 %v717, 16
      %v719 = vadd.s32 %v718, %v716
      %v720 = vand.u32 %v621, 65535
      %v721 = vshra.s32 %v621, 16
      %v722 = vcvt.s32.f32 %v720
      %v723 = vcvt.s32.f32 %v721
      %724 = vmin.xlane.f32.xlu0 %v723
      %v725 = vpop.xlane.xlu0 %724
      %vm726 = vcmp.eq.f32.partialorder %v723, %v725
      %v727 = vsel %vm726, %v722, inf
      %728 = vmin.xlane.f32.xlu0 %v727
      %v729 = vpop.xlane.xlu0 %728
      %v730 = vcvt.f32.s32 %v729
      %v731 = vcvt.f32.s32 %v725
      %v732 = vshll.u32 %v731, 16
      %v733 = vadd.s32 %v732, %v730
      %vm734 = vcmp.eq.s32.totalorder %v589, %v635
      %vm735 = vcmp.eq.s32.totalorder %v589, %v649
      %vm736 = vcmp.eq.s32.totalorder %v589, %v663
      %vm737 = vcmp.eq.s32.totalorder %v589, %v677
      %vm738 = vcmp.eq.s32.totalorder %v589, %v691
      %vm739 = vcmp.eq.s32.totalorder %v589, %v705
      %vm740 = vcmp.eq.s32.totalorder %v589, %v719
      %vm741 = vcmp.eq.s32.totalorder %v589, %v733
      %v742 = vadd.f32 %v591, 1e-08
      %v743 = vadd.f32 %v593, 1e-08
      %v744 = vadd.f32 %v595, 1e-08
      %v745 = vadd.f32 %v597, 1e-08
      %v746 = vadd.f32 %v599, 1e-08
      %v747 = vadd.f32 %v601, 1e-08
      %v748 = vadd.f32 %v603, 1e-08
      %v749 = vadd.f32 %v605, 1e-08
      %v750 = vrcp.pop %v742
      %v751 = vrcp.pop %v743
      %v752 = vrcp.pop %v744
      %v753 = vrcp.pop %v745
      %v754 = vrcp.pop %v746
      %v755 = vrcp.pop %v747
      %v756 = vrcp.pop %v748
      %v757 = vrcp.pop %v749
      %v758 = vadd.f32 %v750, 0.0
      %v759 = vadd.f32 %v751, 0.0
      %v760 = vadd.f32 %v752, 0.0
      %v761 = vadd.f32 %v753, 0.0
      %v762 = vadd.f32 %v754, 0.0
      %v763 = vadd.f32 %v755, 0.0
      %v764 = vadd.f32 %v756, 0.0
      %v765 = vadd.f32 %v757, 0.0
      %v766 = vsel %vm734, %v750, 0.0
      %v767 = vsel %vm735, %v751, 0.0
      %v768 = vsel %vm736, %v752, 0.0
      %v769 = vsel %vm737, %v753, 0.0
      %v770 = vsel %vm738, %v754, 0.0
      %v771 = vsel %vm739, %v755, 0.0
      %v772 = vsel %vm740, %v756, 0.0
      %v773 = vsel %vm741, %v757, 0.0
      %v774 = vsel %vm734, inf, %v580
      %v775 = vsel %vm735, inf, %v581
      %v776 = vsel %vm736, inf, %v582
      %v777 = vsel %vm737, inf, %v583
      %v778 = vsel %vm738, inf, %v584
      %v779 = vsel %vm739, inf, %v585
      %v780 = vsel %vm740, inf, %v586
      %v781 = vsel %vm741, inf, %v587
      %782 = vmin.xlane.f32.xlu0 %v774
      %v783 = vpop.xlane.xlu0 %782
      %784 = vmin.xlane.f32.xlu0 %v775
      %v785 = vpop.xlane.xlu0 %784
      %786 = vmin.xlane.f32.xlu0 %v776
      %v787 = vpop.xlane.xlu0 %786
      %788 = vmin.xlane.f32.xlu0 %v777
      %v789 = vpop.xlane.xlu0 %788
      %790 = vmin.xlane.f32.xlu0 %v778
      %v791 = vpop.xlane.xlu0 %790
      %792 = vmin.xlane.f32.xlu0 %v779
      %v793 = vpop.xlane.xlu0 %792
      %794 = vmin.xlane.f32.xlu0 %v780
      %v795 = vpop.xlane.xlu0 %794
      %796 = vmin.xlane.f32.xlu0 %v781
      %v797 = vpop.xlane.xlu0 %796
      %vm798 = vcmp.eq.f32.partialorder %v774, %v783
      %vm799 = vcmp.eq.f32.partialorder %v775, %v785
      %vm800 = vcmp.eq.f32.partialorder %v776, %v787
      %vm801 = vcmp.eq.f32.partialorder %v777, %v789
      %vm802 = vcmp.eq.f32.partialorder %v778, %v791
      %vm803 = vcmp.eq.f32.partialorder %v779, %v793
      %vm804 = vcmp.eq.f32.partialorder %v780, %v795
      %vm805 = vcmp.eq.f32.partialorder %v781, %v797
      %v806 = vsel %vm798, %v589, 128
      %v807 = vsel %vm799, %v589, 128
      %v808 = vsel %vm800, %v589, 128
      %v809 = vsel %vm801, %v589, 128
      %v810 = vsel %vm802, %v589, 128
      %v811 = vsel %vm803, %v589, 128
      %v812 = vsel %vm804, %v589, 128
      %v813 = vsel %vm805, %v589, 128
      %v814 = vand.u32 %v806, 65535
      %v815 = vshra.s32 %v806, 16
      %v816 = vcvt.s32.f32 %v814
      %v817 = vcvt.s32.f32 %v815
      %818 = vmin.xlane.f32.xlu0 %v817
      %v819 = vpop.xlane.xlu0 %818
      %vm820 = vcmp.eq.f32.partialorder %v817, %v819
      %v821 = vsel %vm820, %v816, inf
      %822 = vmin.xlane.f32.xlu0 %v821
      %v823 = vpop.xlane.xlu0 %822
      %v824 = vcvt.f32.s32 %v823
      %v825 = vcvt.f32.s32 %v819
      %v826 = vshll.u32 %v825, 16
      %v827 = vadd.s32 %v826, %v824
      %v828 = vand.u32 %v807, 65535
      %v829 = vshra.s32 %v807, 16
      %v830 = vcvt.s32.f32 %v828
      %v831 = vcvt.s32.f32 %v829
      %832 = vmin.xlane.f32.xlu0 %v831
      %v833 = vpop.xlane.xlu0 %832
      %vm834 = vcmp.eq.f32.partialorder %v831, %v833
      %v835 = vsel %vm834, %v830, inf
      %836 = vmin.xlane.f32.xlu0 %v835
      %v837 = vpop.xlane.xlu0 %836
      %v838 = vcvt.f32.s32 %v837
      %v839 = vcvt.f32.s32 %v833
      %v840 = vshll.u32 %v839, 16
      %v841 = vadd.s32 %v840, %v838
      %v842 = vand.u32 %v808, 65535
      %v843 = vshra.s32 %v808, 16
      %v844 = vcvt.s32.f32 %v842
      %v845 = vcvt.s32.f32 %v843
      %846 = vmin.xlane.f32.xlu0 %v845
      %v847 = vpop.xlane.xlu0 %846
      %vm848 = vcmp.eq.f32.partialorder %v845, %v847
      %v849 = vsel %vm848, %v844, inf
      %850 = vmin.xlane.f32.xlu0 %v849
      %v851 = vpop.xlane.xlu0 %850
      %v852 = vcvt.f32.s32 %v851
      %v853 = vcvt.f32.s32 %v847
      %v854 = vshll.u32 %v853, 16
      %v855 = vadd.s32 %v854, %v852
      %v856 = vand.u32 %v809, 65535
      %v857 = vshra.s32 %v809, 16
      %v858 = vcvt.s32.f32 %v856
      %v859 = vcvt.s32.f32 %v857
      %860 = vmin.xlane.f32.xlu0 %v859
      %v861 = vpop.xlane.xlu0 %860
      %vm862 = vcmp.eq.f32.partialorder %v859, %v861
      %v863 = vsel %vm862, %v858, inf
      %864 = vmin.xlane.f32.xlu0 %v863
      %v865 = vpop.xlane.xlu0 %864
      %v866 = vcvt.f32.s32 %v865
      %v867 = vcvt.f32.s32 %v861
      %v868 = vshll.u32 %v867, 16
      %v869 = vadd.s32 %v868, %v866
      %v870 = vand.u32 %v810, 65535
      %v871 = vshra.s32 %v810, 16
      %v872 = vcvt.s32.f32 %v870
      %v873 = vcvt.s32.f32 %v871
      %874 = vmin.xlane.f32.xlu0 %v873
      %v875 = vpop.xlane.xlu0 %874
      %vm876 = vcmp.eq.f32.partialorder %v873, %v875
      %v877 = vsel %vm876, %v872, inf
      %878 = vmin.xlane.f32.xlu0 %v877
      %v879 = vpop.xlane.xlu0 %878
      %v880 = vcvt.f32.s32 %v879
      %v881 = vcvt.f32.s32 %v875
      %v882 = vshll.u32 %v881, 16
      %v883 = vadd.s32 %v882, %v880
      %v884 = vand.u32 %v811, 65535
      %v885 = vshra.s32 %v811, 16
      %v886 = vcvt.s32.f32 %v884
      %v887 = vcvt.s32.f32 %v885
      %888 = vmin.xlane.f32.xlu0 %v887
      %v889 = vpop.xlane.xlu0 %888
      %vm890 = vcmp.eq.f32.partialorder %v887, %v889
      %v891 = vsel %vm890, %v886, inf
      %892 = vmin.xlane.f32.xlu0 %v891
      %v893 = vpop.xlane.xlu0 %892
      %v894 = vcvt.f32.s32 %v893
      %v895 = vcvt.f32.s32 %v889
      %v896 = vshll.u32 %v895, 16
      %v897 = vadd.s32 %v896, %v894
      %v898 = vand.u32 %v812, 65535
      %v899 = vshra.s32 %v812, 16
      %v900 = vcvt.s32.f32 %v898
      %v901 = vcvt.s32.f32 %v899
      %902 = vmin.xlane.f32.xlu0 %v901
      %v903 = vpop.xlane.xlu0 %902
      %vm904 = vcmp.eq.f32.partialorder %v901, %v903
      %v905 = vsel %vm904, %v900, inf
      %906 = vmin.xlane.f32.xlu0 %v905
      %v907 = vpop.xlane.xlu0 %906
      %v908 = vcvt.f32.s32 %v907
      %v909 = vcvt.f32.s32 %v903
      %v910 = vshll.u32 %v909, 16
      %v911 = vadd.s32 %v910, %v908
      %v912 = vand.u32 %v813, 65535
      %v913 = vshra.s32 %v813, 16
      %v914 = vcvt.s32.f32 %v912
      %v915 = vcvt.s32.f32 %v913
      %916 = vmin.xlane.f32.xlu0 %v915
      %v917 = vpop.xlane.xlu0 %916
      %vm918 = vcmp.eq.f32.partialorder %v915, %v917
      %v919 = vsel %vm918, %v914, inf
      %920 = vmin.xlane.f32.xlu0 %v919
      %v921 = vpop.xlane.xlu0 %920
      %v922 = vcvt.f32.s32 %v921
      %v923 = vcvt.f32.s32 %v917
      %v924 = vshll.u32 %v923, 16
      %v925 = vadd.s32 %v924, %v922
      %vm926 = vcmp.eq.s32.totalorder %v589, %v827
      %vm927 = vcmp.eq.s32.totalorder %v589, %v841
      %vm928 = vcmp.eq.s32.totalorder %v589, %v855
      %vm929 = vcmp.eq.s32.totalorder %v589, %v869
      %vm930 = vcmp.eq.s32.totalorder %v589, %v883
      %vm931 = vcmp.eq.s32.totalorder %v589, %v897
      %vm932 = vcmp.eq.s32.totalorder %v589, %v911
      %vm933 = vcmp.eq.s32.totalorder %v589, %v925
      %v934 = vadd.f32 %v783, 1e-08
      %v935 = vadd.f32 %v785, 1e-08
      %v936 = vadd.f32 %v787, 1e-08
      %v937 = vadd.f32 %v789, 1e-08
      %v938 = vadd.f32 %v791, 1e-08
      %v939 = vadd.f32 %v793, 1e-08
      %v940 = vadd.f32 %v795, 1e-08
      %v941 = vadd.f32 %v797, 1e-08
      %v942 = vrcp.pop %v934
      %v943 = vrcp.pop %v935
      %v944 = vrcp.pop %v936
      %v945 = vrcp.pop %v937
      %v946 = vrcp.pop %v938
      %v947 = vrcp.pop %v939
      %v948 = vrcp.pop %v940
      %v949 = vrcp.pop %v941
      %v950 = vadd.f32 %v758, %v942
      %v951 = vadd.f32 %v759, %v943
      %v952 = vadd.f32 %v760, %v944
      %v953 = vadd.f32 %v761, %v945
      %v954 = vadd.f32 %v762, %v946
      %v955 = vadd.f32 %v763, %v947
      %v956 = vadd.f32 %v764, %v948
      %v957 = vadd.f32 %v765, %v949
      %v958 = vsel %vm926, %v942, %v766
      %v959 = vsel %vm927, %v943, %v767
      %v960 = vsel %vm928, %v944, %v768
      %v961 = vsel %vm929, %v945, %v769
      %v962 = vsel %vm930, %v946, %v770
      %v963 = vsel %vm931, %v947, %v771
      %v964 = vsel %vm932, %v948, %v772
      %v965 = vsel %vm933, %v949, %v773
      %v966 = vsel %vm926, inf, %v774
      %v967 = vsel %vm927, inf, %v775
      %v968 = vsel %vm928, inf, %v776
      %v969 = vsel %vm929, inf, %v777
      %v970 = vsel %vm930, inf, %v778
      %v971 = vsel %vm931, inf, %v779
      %v972 = vsel %vm932, inf, %v780
      %v973 = vsel %vm933, inf, %v781
      %974 = vmin.xlane.f32.xlu0 %v966
      %v975 = vpop.xlane.xlu0 %974
      %976 = vmin.xlane.f32.xlu0 %v967
      %v977 = vpop.xlane.xlu0 %976
      %978 = vmin.xlane.f32.xlu0 %v968
      %v979 = vpop.xlane.xlu0 %978
      %980 = vmin.xlane.f32.xlu0 %v969
      %v981 = vpop.xlane.xlu0 %980
      %982 = vmin.xlane.f32.xlu0 %v970
      %v983 = vpop.xlane.xlu0 %982
      %984 = vmin.xlane.f32.xlu0 %v971
      %v985 = vpop.xlane.xlu0 %984
      %986 = vmin.xlane.f32.xlu0 %v972
      %v987 = vpop.xlane.xlu0 %986
      %988 = vmin.xlane.f32.xlu0 %v973
      %v989 = vpop.xlane.xlu0 %988
      %vm990 = vcmp.eq.f32.partialorder %v966, %v975
      %vm991 = vcmp.eq.f32.partialorder %v967, %v977
      %vm992 = vcmp.eq.f32.partialorder %v968, %v979
      %vm993 = vcmp.eq.f32.partialorder %v969, %v981
      %vm994 = vcmp.eq.f32.partialorder %v970, %v983
      %vm995 = vcmp.eq.f32.partialorder %v971, %v985
      %vm996 = vcmp.eq.f32.partialorder %v972, %v987
      %vm997 = vcmp.eq.f32.partialorder %v973, %v989
      %v998 = vsel %vm990, %v589, 128
      %v999 = vsel %vm991, %v589, 128
      %v1000 = vsel %vm992, %v589, 128
      %v1001 = vsel %vm993, %v589, 128
      %v1002 = vsel %vm994, %v589, 128
      %v1003 = vsel %vm995, %v589, 128
      %v1004 = vsel %vm996, %v589, 128
      %v1005 = vsel %vm997, %v589, 128
      %v1006 = vand.u32 %v998, 65535
      %v1007 = vshra.s32 %v998, 16
      %v1008 = vcvt.s32.f32 %v1006
      %v1009 = vcvt.s32.f32 %v1007
      %1010 = vmin.xlane.f32.xlu0 %v1009
      %v1011 = vpop.xlane.xlu0 %1010
      %vm1012 = vcmp.eq.f32.partialorder %v1009, %v1011
      %v1013 = vsel %vm1012, %v1008, inf
      %1014 = vmin.xlane.f32.xlu0 %v1013
      %v1015 = vpop.xlane.xlu0 %1014
      %v1016 = vcvt.f32.s32 %v1015
      %v1017 = vcvt.f32.s32 %v1011
      %v1018 = vshll.u32 %v1017, 16
      %v1019 = vadd.s32 %v1018, %v1016
      %v1020 = vand.u32 %v999, 65535
      %v1021 = vshra.s32 %v999, 16
      %v1022 = vcvt.s32.f32 %v1020
      %v1023 = vcvt.s32.f32 %v1021
      %1024 = vmin.xlane.f32.xlu0 %v1023
      %v1025 = vpop.xlane.xlu0 %1024
      %vm1026 = vcmp.eq.f32.partialorder %v1023, %v1025
      %v1027 = vsel %vm1026, %v1022, inf
      %1028 = vmin.xlane.f32.xlu0 %v1027
      %v1029 = vpop.xlane.xlu0 %1028
      %v1030 = vcvt.f32.s32 %v1029
      %v1031 = vcvt.f32.s32 %v1025
      %v1032 = vshll.u32 %v1031, 16
      %v1033 = vadd.s32 %v1032, %v1030
      %v1034 = vand.u32 %v1000, 65535
      %v1035 = vshra.s32 %v1000, 16
      %v1036 = vcvt.s32.f32 %v1034
      %v1037 = vcvt.s32.f32 %v1035
      %1038 = vmin.xlane.f32.xlu0 %v1037
      %v1039 = vpop.xlane.xlu0 %1038
      %vm1040 = vcmp.eq.f32.partialorder %v1037, %v1039
      %v1041 = vsel %vm1040, %v1036, inf
      %1042 = vmin.xlane.f32.xlu0 %v1041
      %v1043 = vpop.xlane.xlu0 %1042
      %v1044 = vcvt.f32.s32 %v1043
      %v1045 = vcvt.f32.s32 %v1039
      %v1046 = vshll.u32 %v1045, 16
      %v1047 = vadd.s32 %v1046, %v1044
      %v1048 = vand.u32 %v1001, 65535
      %v1049 = vshra.s32 %v1001, 16
      %v1050 = vcvt.s32.f32 %v1048
      %v1051 = vcvt.s32.f32 %v1049
      %1052 = vmin.xlane.f32.xlu0 %v1051
      %v1053 = vpop.xlane.xlu0 %1052
      %vm1054 = vcmp.eq.f32.partialorder %v1051, %v1053
      %v1055 = vsel %vm1054, %v1050, inf
      %1056 = vmin.xlane.f32.xlu0 %v1055
      %v1057 = vpop.xlane.xlu0 %1056
      %v1058 = vcvt.f32.s32 %v1057
      %v1059 = vcvt.f32.s32 %v1053
      %v1060 = vshll.u32 %v1059, 16
      %v1061 = vadd.s32 %v1060, %v1058
      %v1062 = vand.u32 %v1002, 65535
      %v1063 = vshra.s32 %v1002, 16
      %v1064 = vcvt.s32.f32 %v1062
      %v1065 = vcvt.s32.f32 %v1063
      %1066 = vmin.xlane.f32.xlu0 %v1065
      %v1067 = vpop.xlane.xlu0 %1066
      %vm1068 = vcmp.eq.f32.partialorder %v1065, %v1067
      %v1069 = vsel %vm1068, %v1064, inf
      %1070 = vmin.xlane.f32.xlu0 %v1069
      %v1071 = vpop.xlane.xlu0 %1070
      %v1072 = vcvt.f32.s32 %v1071
      %v1073 = vcvt.f32.s32 %v1067
      %v1074 = vshll.u32 %v1073, 16
      %v1075 = vadd.s32 %v1074, %v1072
      %v1076 = vand.u32 %v1003, 65535
      %v1077 = vshra.s32 %v1003, 16
      %v1078 = vcvt.s32.f32 %v1076
      %v1079 = vcvt.s32.f32 %v1077
      %1080 = vmin.xlane.f32.xlu0 %v1079
      %v1081 = vpop.xlane.xlu0 %1080
      %vm1082 = vcmp.eq.f32.partialorder %v1079, %v1081
      %v1083 = vsel %vm1082, %v1078, inf
      %1084 = vmin.xlane.f32.xlu0 %v1083
      %v1085 = vpop.xlane.xlu0 %1084
      %v1086 = vcvt.f32.s32 %v1085
      %v1087 = vcvt.f32.s32 %v1081
      %v1088 = vshll.u32 %v1087, 16
      %v1089 = vadd.s32 %v1088, %v1086
      %v1090 = vand.u32 %v1004, 65535
      %v1091 = vshra.s32 %v1004, 16
      %v1092 = vcvt.s32.f32 %v1090
      %v1093 = vcvt.s32.f32 %v1091
      %1094 = vmin.xlane.f32.xlu0 %v1093
      %v1095 = vpop.xlane.xlu0 %1094
      %vm1096 = vcmp.eq.f32.partialorder %v1093, %v1095
      %v1097 = vsel %vm1096, %v1092, inf
      %1098 = vmin.xlane.f32.xlu0 %v1097
      %v1099 = vpop.xlane.xlu0 %1098
      %v1100 = vcvt.f32.s32 %v1099
      %v1101 = vcvt.f32.s32 %v1095
      %v1102 = vshll.u32 %v1101, 16
      %v1103 = vadd.s32 %v1102, %v1100
      %v1104 = vand.u32 %v1005, 65535
      %v1105 = vshra.s32 %v1005, 16
      %v1106 = vcvt.s32.f32 %v1104
      %v1107 = vcvt.s32.f32 %v1105
      %1108 = vmin.xlane.f32.xlu0 %v1107
      %v1109 = vpop.xlane.xlu0 %1108
      %vm1110 = vcmp.eq.f32.partialorder %v1107, %v1109
      %v1111 = vsel %vm1110, %v1106, inf
      %1112 = vmin.xlane.f32.xlu0 %v1111
      %v1113 = vpop.xlane.xlu0 %1112
      %v1114 = vcvt.f32.s32 %v1113
      %v1115 = vcvt.f32.s32 %v1109
      %v1116 = vshll.u32 %v1115, 16
      %v1117 = vadd.s32 %v1116, %v1114
      %vm1118 = vcmp.eq.s32.totalorder %v589, %v1019
      %vm1119 = vcmp.eq.s32.totalorder %v589, %v1033
      %vm1120 = vcmp.eq.s32.totalorder %v589, %v1047
      %vm1121 = vcmp.eq.s32.totalorder %v589, %v1061
      %vm1122 = vcmp.eq.s32.totalorder %v589, %v1075
      %vm1123 = vcmp.eq.s32.totalorder %v589, %v1089
      %vm1124 = vcmp.eq.s32.totalorder %v589, %v1103
      %vm1125 = vcmp.eq.s32.totalorder %v589, %v1117
      %v1126 = vadd.f32 %v975, 1e-08
      %v1127 = vadd.f32 %v977, 1e-08
      %v1128 = vadd.f32 %v979, 1e-08
      %v1129 = vadd.f32 %v981, 1e-08
      %v1130 = vadd.f32 %v983, 1e-08
      %v1131 = vadd.f32 %v985, 1e-08
      %v1132 = vadd.f32 %v987, 1e-08
      %v1133 = vadd.f32 %v989, 1e-08
      %v1134 = vrcp.pop %v1126
      %v1135 = vrcp.pop %v1127
      %v1136 = vrcp.pop %v1128
      %v1137 = vrcp.pop %v1129
      %v1138 = vrcp.pop %v1130
      %v1139 = vrcp.pop %v1131
      %v1140 = vrcp.pop %v1132
      %v1141 = vrcp.pop %v1133
      %v1142 = vadd.f32 %v950, %v1134
      %v1143 = vadd.f32 %v951, %v1135
      %v1144 = vadd.f32 %v952, %v1136
      %v1145 = vadd.f32 %v953, %v1137
      %v1146 = vadd.f32 %v954, %v1138
      %v1147 = vadd.f32 %v955, %v1139
      %v1148 = vadd.f32 %v956, %v1140
      %v1149 = vadd.f32 %v957, %v1141
      %v1150 = vsel %vm1118, %v1134, %v958
      %v1151 = vsel %vm1119, %v1135, %v959
      %v1152 = vsel %vm1120, %v1136, %v960
      %v1153 = vsel %vm1121, %v1137, %v961
      %v1154 = vsel %vm1122, %v1138, %v962
      %v1155 = vsel %vm1123, %v1139, %v963
      %v1156 = vsel %vm1124, %v1140, %v964
      %v1157 = vsel %vm1125, %v1141, %v965
      %v1158 = vrcp.pop %v1142
      %v1159 = vmul.f32 %v1142, %v1158
      %v1160 = vsub.f32 1.0, %v1159
      %v1161 = vmul.f32 %v1158, %v1160
      %v1162 = vadd.f32 %v1158, %v1161
      %vm1163 = vweird.f32 %v1142
      %vm1164 = vweird.f32 %v1158
      %vm1165 = vmor %vm1163, %vm1164
      %v1166 = vsel %vm1165, %v1158, %v1162
      %v1167 = vand.u32 2147483647, %v1142
      %vm1168 = vcmp.eq.f32.partialorder %v1167, 8.507059e+37
      %v1169 = vand.u32 %v1142, 2147483648
      %v1170 = vor.u32 1.1754944e-38, %v1169
      %v1171 = vsel %vm1168, %v1170, %v1166
      %v1172 = vrcp.pop %v1143
      %v1173 = vmul.f32 %v1143, %v1172
      %v1174 = vsub.f32 1.0, %v1173
      %v1175 = vmul.f32 %v1172, %v1174
      %v1176 = vadd.f32 %v1172, %v1175
      %vm1177 = vweird.f32 %v1143
      %vm1178 = vweird.f32 %v1172
      %vm1179 = vmor %vm1177, %vm1178
      %v1180 = vsel %vm1179, %v1172, %v1176
      %v1181 = vand.u32 2147483647, %v1143
      %vm1182 = vcmp.eq.f32.partialorder %v1181, 8.507059e+37
      %v1183 = vand.u32 %v1143, 2147483648
      %v1184 = vor.u32 1.1754944e-38, %v1183
      %v1185 = vsel %vm1182, %v1184, %v1180
      %v1186 = vrcp.pop %v1144
      %v1187 = vmul.f32 %v1144, %v1186
      %v1188 = vsub.f32 1.0, %v1187
      %v1189 = vmul.f32 %v1186, %v1188
      %v1190 = vadd.f32 %v1186, %v1189
      %vm1191 = vweird.f32 %v1144
      %vm1192 = vweird.f32 %v1186
      %vm1193 = vmor %vm1191, %vm1192
      %v1194 = vsel %vm1193, %v1186, %v1190
      %v1195 = vand.u32 2147483647, %v1144
      %vm1196 = vcmp.eq.f32.partialorder %v1195, 8.507059e+37
      %v1197 = vand.u32 %v1144, 2147483648
      %v1198 = vor.u32 1.1754944e-38, %v1197
      %v1199 = vsel %vm1196, %v1198, %v1194
      %v1200 = vrcp.pop %v1145
      %v1201 = vmul.f32 %v1145, %v1200
      %v1202 = vsub.f32 1.0, %v1201
      %v1203 = vmul.f32 %v1200, %v1202
      %v1204 = vadd.f32 %v1200, %v1203
      %vm1205 = vweird.f32 %v1145
      %vm1206 = vweird.f32 %v1200
      %vm1207 = vmor %vm1205, %vm1206
      %v1208 = vsel %vm1207, %v1200, %v1204
      %v1209 = vand.u32 2147483647, %v1145
      %vm1210 = vcmp.eq.f32.partialorder %v1209, 8.507059e+37
      %v1211 = vand.u32 %v1145, 2147483648
      %v1212 = vor.u32 1.1754944e-38, %v1211
      %v1213 = vsel %vm1210, %v1212, %v1208
      %v1214 = vrcp.pop %v1146
      %v1215 = vmul.f32 %v1146, %v1214
      %v1216 = vsub.f32 1.0, %v1215
      %v1217 = vmul.f32 %v1214, %v1216
      %v1218 = vadd.f32 %v1214, %v1217
      %vm1219 = vweird.f32 %v1146
      %vm1220 = vweird.f32 %v1214
      %vm1221 = vmor %vm1219, %vm1220
      %v1222 = vsel %vm1221, %v1214, %v1218
      %v1223 = vand.u32 2147483647, %v1146
      %vm1224 = vcmp.eq.f32.partialorder %v1223, 8.507059e+37
      %v1225 = vand.u32 %v1146, 2147483648
      %v1226 = vor.u32 1.1754944e-38, %v1225
      %v1227 = vsel %vm1224, %v1226, %v1222
      %v1228 = vrcp.pop %v1147
      %v1229 = vmul.f32 %v1147, %v1228
      %v1230 = vsub.f32 1.0, %v1229
      %v1231 = vmul.f32 %v1228, %v1230
      %v1232 = vadd.f32 %v1228, %v1231
      %vm1233 = vweird.f32 %v1147
      %vm1234 = vweird.f32 %v1228
      %vm1235 = vmor %vm1233, %vm1234
      %v1236 = vsel %vm1235, %v1228, %v1232
      %v1237 = vand.u32 2147483647, %v1147
      %vm1238 = vcmp.eq.f32.partialorder %v1237, 8.507059e+37
      %v1239 = vand.u32 %v1147, 2147483648
      %v1240 = vor.u32 1.1754944e-38, %v1239
      %v1241 = vsel %vm1238, %v1240, %v1236
      %v1242 = vrcp.pop %v1148
      %v1243 = vmul.f32 %v1148, %v1242
      %v1244 = vsub.f32 1.0, %v1243
      %v1245 = vmul.f32 %v1242, %v1244
      %v1246 = vadd.f32 %v1242, %v1245
      %vm1247 = vweird.f32 %v1148
      %vm1248 = vweird.f32 %v1242
      %vm1249 = vmor %vm1247, %vm1248
      %v1250 = vsel %vm1249, %v1242, %v1246
      %v1251 = vand.u32 2147483647, %v1148
      %vm1252 = vcmp.eq.f32.partialorder %v1251, 8.507059e+37
      %v1253 = vand.u32 %v1148, 2147483648
      %v1254 = vor.u32 1.1754944e-38, %v1253
      %v1255 = vsel %vm1252, %v1254, %v1250
      %v1256 = vrcp.pop %v1149
      %v1257 = vmul.f32 %v1149, %v1256
      %v1258 = vsub.f32 1.0, %v1257
      %v1259 = vmul.f32 %v1256, %v1258
      %v1260 = vadd.f32 %v1256, %v1259
      %vm1261 = vweird.f32 %v1149
      %vm1262 = vweird.f32 %v1256
      %vm1263 = vmor %vm1261, %vm1262
      %v1264 = vsel %vm1263, %v1256, %v1260
      %v1265 = vand.u32 2147483647, %v1149
      %vm1266 = vcmp.eq.f32.partialorder %v1265, 8.507059e+37
      %v1267 = vand.u32 %v1149, 2147483648
      %v1268 = vor.u32 1.1754944e-38, %v1267
      %v1269 = vsel %vm1266, %v1268, %v1264
      %v1270 = vmul.f32 %v1150, %v1171
      %v1271 = vmul.f32 %v1151, %v1185
      %v1272 = vmul.f32 %v1152, %v1199
      %v1273 = vmul.f32 %v1153, %v1213
      %v1274 = vmul.f32 %v1154, %v1227
      %v1275 = vmul.f32 %v1155, %v1241
      %v1276 = vmul.f32 %v1156, %v1255
      %v1277 = vmul.f32 %v1157, %v1269
      %v1278 = vpack.c.bf16 %v1271, %v1270
      %v1279 = vpack.c.bf16 %v1273, %v1272
      %v1280 = vpack.c.bf16 %v1275, %v1274
      %v1281 = vpack.c.bf16 %v1277, %v1276
      %v1282 = vld [vmem:[%s380] sm:$0xf]
      %v1283 = vld [vmem:[%s380 + $0x4] sm:$0xf]
      %v1284 = vld [vmem:[%s380 + $0x8] sm:$0xf]
      %v1285 = vld [vmem:[%s380 + $0xc] sm:$0xf]
      %v1286 = vld [vmem:[%s380 + $0x10] sm:$0xf]
      %v1287 = vld [vmem:[%s380 + $0x14] sm:$0xf]
      %v1288 = vld [vmem:[%s380 + $0x18] sm:$0xf]
      %v1289 = vld [vmem:[%s380 + $0x1c] sm:$0xf]
      %v1290 = vld [vmem:[%s380 + $0x20] sm:$0xf]
      %v1291 = vld [vmem:[%s380 + $0x24] sm:$0xf]
      %v1292 = vld [vmem:[%s380 + $0x28] sm:$0xf]
      %v1293 = vld [vmem:[%s380 + $0x2c] sm:$0xf]
      %v1294 = vld [vmem:[%s380 + $0x30] sm:$0xf]
      %v1295 = vld [vmem:[%s380 + $0x34] sm:$0xf]
      %v1296 = vld [vmem:[%s380 + $0x38] sm:$0xf]
      %v1297 = vld [vmem:[%s380 + $0x3c] sm:$0xf]
      %v1298 = vld [vmem:[%s389] sm:$0xff]
      %v1299 = vld [vmem:[%s389 + $0x8] sm:$0xff]
      %v1300 = vld [vmem:[%s389 + $0x10] sm:$0xff]
      %v1301 = vld [vmem:[%s389 + $0x18] sm:$0xff]
      %v1302 = vld [vmem:[%s389 + $0x20] sm:$0xff]
      %v1303 = vld [vmem:[%s389 + $0x28] sm:$0xff]
      %v1304 = vld [vmem:[%s389 + $0x30] sm:$0xff]
      %v1305 = vld [vmem:[%s389 + $0x38] sm:$0xff]
      %v1306 = vpack.c.bf16 %v1299, %v1298
      %v1307 = vpack.c.bf16 %v1301, %v1300
      %v1308 = vpack.c.bf16 %v1303, %v1302
      %v1309 = vpack.c.bf16 %v1305, %v1304
      %v1310 = vld [vmem:[%s4] sm:$0xf]
      %vm1311 = vcmask 64512
      %v1313 = vsel %vm1311, %v1306, 0
      %v1316 = vsel %vm1311, %v1307, 0
      %v1319 = vsel %vm1311, %v1308, 0
      %v1322 = vsel %vm1311, %v1309, 0
      %vm1324 = vcmask 1043456
      %v1326 = vsel %vm1324, %v1310, 0
      %1328 = vmatpush.bf16.msra.mxu0 0
      %1329 = vmatpush.bf16.msra.mxu0 0
      %1330 = vmatpush.bf16.msra.mxu0 0
      %1331 = vmatpush.bf16.msra.mxu0 0
      %1332 = vmatpush.bf16.msra.mxu0 0
      %1333 = vmatpush.bf16.msra.mxu0 0
      %1334 = vmatpush.bf16.msra.mxu0 0
      %1335 = vmatpush.bf16.msra.mxu0 %v1326
      %1336 = vmatmul.bf16.gmra.mxu0 %v1313
      %v1337 = vpop.f32.mrf.mxu0
      %v1338 = vadd.f32 0.0, %v1337
      %v1339 = vpop.f32.mrf.mxu0
      %v1340 = vadd.f32 0.0, %v1339
      %1341 = vmatmul.bf16.gmra.mxu0 %v1316
      %v1342 = vpop.f32.mrf.mxu0
      %v1343 = vadd.f32 0.0, %v1342
      %v1344 = vpop.f32.mrf.mxu0
      %v1345 = vadd.f32 0.0, %v1344
      %1346 = vmatmul.bf16.gmra.mxu0 %v1319
      %v1347 = vpop.f32.mrf.mxu0
      %v1348 = vadd.f32 0.0, %v1347
      %v1349 = vpop.f32.mrf.mxu0
      %v1350 = vadd.f32 0.0, %v1349
      %1351 = vmatmul.bf16.gmra.mxu0 %v1322
      %v1352 = vpop.f32.mrf.mxu0
      %v1353 = vadd.f32 0.0, %v1352
      %v1354 = vpop.f32.mrf.mxu0
      %v1355 = vadd.f32 0.0, %v1354
      %1356 = vdwg.mxu0
      %v1373 = vunpack.c.l.b16 %v1282
      %v1374 = vunpack.c.l.b16 %v1283
      %v1375 = vunpack.c.l.b16 %v1284
      %v1376 = vunpack.c.l.b16 %v1285
      %v1377 = vunpack.c.l.b16 %v1286
      %v1378 = vunpack.c.l.b16 %v1287
      %v1379 = vunpack.c.l.b16 %v1288
      %v1380 = vunpack.c.l.b16 %v1289
      %v1381 = vunpack.c.l.b16 %v1290
      %v1382 = vunpack.c.l.b16 %v1291
      %v1383 = vunpack.c.l.b16 %v1292
      %v1384 = vunpack.c.l.b16 %v1293
      %v1385 = vunpack.c.l.b16 %v1294
      %v1386 = vunpack.c.l.b16 %v1295
      %v1387 = vunpack.c.l.b16 %v1296
      %v1388 = vunpack.c.l.b16 %v1297
      %v1389 = vpack.c.b16 %v1374, %v1373
      %v1390 = vpack.c.b16 %v1376, %v1375
      %v1391 = vpack.c.b16 %v1378, %v1377
      %v1392 = vpack.c.b16 %v1380, %v1379
      %v1393 = vpack.c.b16 %v1382, %v1381
      %v1394 = vpack.c.b16 %v1384, %v1383
      %v1395 = vpack.c.b16 %v1386, %v1385
      %v1396 = vpack.c.b16 %v1388, %v1387
      %1405 = vmatpush.bf16.msra.mxu0 %v1396
      %1406 = vmatpush.bf16.msra.mxu0 %v1395
      %1407 = vmatpush.bf16.msra.mxu0 %v1394
      %1408 = vmatpush.bf16.msra.mxu0 %v1393
      %1409 = vmatpush.bf16.msra.mxu0 %v1392
      %1410 = vmatpush.bf16.msra.mxu0 %v1391
      %1411 = vmatpush.bf16.msra.mxu0 %v1390
      %1412 = vmatpush.bf16.msra.mxu0 %v1389
      %1413 = vmatmul.bf16.gmra.mxu0 %v1278
      %v1414 = vpop.f32.mrf.mxu0
      %v1415 = vadd.f32 %v1338, %v1414
      %v1416 = vpop.f32.mrf.mxu0
      %v1417 = vadd.f32 %v1340, %v1416
      %1418 = vmatmul.bf16.gmra.mxu0 %v1279
      %v1419 = vpop.f32.mrf.mxu0
      %v1420 = vadd.f32 %v1343, %v1419
      %v1421 = vpop.f32.mrf.mxu0
      %v1422 = vadd.f32 %v1345, %v1421
      %1423 = vmatmul.bf16.gmra.mxu0 %v1280
      %v1424 = vpop.f32.mrf.mxu0
      %v1425 = vadd.f32 %v1348, %v1424
      %v1426 = vpop.f32.mrf.mxu0
      %v1427 = vadd.f32 %v1350, %v1426
      %1428 = vmatmul.bf16.gmra.mxu0 %v1281
      %v1429 = vpop.f32.mrf.mxu0
      %v1430 = vadd.f32 %v1353, %v1429
      %v1431 = vpop.f32.mrf.mxu0
      %v1432 = vadd.f32 %v1355, %v1431
      %1433 = vdwg.mxu0
      %v1434 = vld [vmem:[%s5] sm:$0x1]
      %v1436 = vperm.slane %v1434, 0
      %v1438 = vadd.f32 %v1415, %v1436
      %v1439 = vadd.f32 %v1417, %v1436
      %v1440 = vadd.f32 %v1420, %v1436
      %v1441 = vadd.f32 %v1422, %v1436
      %v1442 = vadd.f32 %v1425, %v1436
      %v1443 = vadd.f32 %v1427, %v1436
      %v1444 = vadd.f32 %v1430, %v1436
      %v1445 = vadd.f32 %v1432, %v1436
      %v1446 = vpack.c.bf16 %v1438, %v1438
      %v1447 = vpack.c.bf16 %v1439, %v1439
      %v1448 = vpack.c.bf16 %v1440, %v1440
      %v1449 = vpack.c.bf16 %v1441, %v1441
      %v1450 = vpack.c.bf16 %v1442, %v1442
      %v1451 = vpack.c.bf16 %v1443, %v1443
      %v1452 = vpack.c.bf16 %v1444, %v1444
      %v1453 = vpack.c.bf16 %v1445, %v1445
      %vm1454 = vcmask 257024
      %1455 = vst.msk [vmem:[%s399] sm:$0xf] %vm1454, %v1446
      %1456 = vst.msk [vmem:[%s399 + $0x4] sm:$0xf] %vm1454, %v1447
      %1457 = vst.msk [vmem:[%s399 + $0x8] sm:$0xf] %vm1454, %v1448
      %1458 = vst.msk [vmem:[%s399 + $0xc] sm:$0xf] %vm1454, %v1449
      %1459 = vst.msk [vmem:[%s399 + $0x10] sm:$0xf] %vm1454, %v1450
      %1460 = vst.msk [vmem:[%s399 + $0x14] sm:$0xf] %vm1454, %v1451
      %1461 = vst.msk [vmem:[%s399 + $0x18] sm:$0xf] %vm1454, %v1452
      %1462 = vst.msk [vmem:[%s399 + $0x1c] sm:$0xf] %vm1454, %v1453
      %vm1463 = vcmask 261120
      %v1464 = vsel %vm1463, %v1438, 0.0
      %v1465 = vsel %vm1463, %v1439, 0.0
      %v1466 = vadd.f32 %v1464, %v1465
      %v1467 = vsel %vm1463, %v1440, 0.0
      %v1468 = vadd.f32 %v1466, %v1467
      %v1469 = vsel %vm1463, %v1441, 0.0
      %v1470 = vadd.f32 %v1468, %v1469
      %v1471 = vsel %vm1463, %v1442, 0.0
      %v1472 = vadd.f32 %v1470, %v1471
      %v1473 = vsel %vm1463, %v1443, 0.0
      %v1474 = vadd.f32 %v1472, %v1473
      %v1475 = vsel %vm1463, %v1444, 0.0
      %v1476 = vadd.f32 %v1474, %v1475
      %v1477 = vsel %vm1463, %v1445, 0.0
      %v1478 = vadd.f32 %v1476, %v1477
      %v1479 = vrot.slane %v1478, 4
      %v1480 = vadd.f32 %v1478, %v1479
      %v1481 = vrot.slane %v1480, 2
      %v1482 = vadd.f32 %v1480, %v1481
      %v1483 = vrot.slane %v1482, 1
      %v1484 = vadd.f32 %v1482, %v1483
      %v1485 = vmul.f32 %v1438, %v1438
      %v1486 = vmul.f32 %v1439, %v1439
      %v1487 = vmul.f32 %v1440, %v1440
      %v1488 = vmul.f32 %v1441, %v1441
      %v1489 = vmul.f32 %v1442, %v1442
      %v1490 = vmul.f32 %v1443, %v1443
      %v1491 = vmul.f32 %v1444, %v1444
      %v1492 = vmul.f32 %v1445, %v1445
      %v1493 = vsel %vm1463, %v1485, 0.0
      %v1494 = vsel %vm1463, %v1486, 0.0
      %v1495 = vadd.f32 %v1493, %v1494
      %v1496 = vsel %vm1463, %v1487, 0.0
      %v1497 = vadd.f32 %v1495, %v1496
      %v1498 = vsel %vm1463, %v1488, 0.0
      %v1499 = vadd.f32 %v1497, %v1498
      %v1500 = vsel %vm1463, %v1489, 0.0
      %v1501 = vadd.f32 %v1499, %v1500
      %v1502 = vsel %vm1463, %v1490, 0.0
      %v1503 = vadd.f32 %v1501, %v1502
      %v1504 = vsel %vm1463, %v1491, 0.0
      %v1505 = vadd.f32 %v1503, %v1504
      %v1506 = vsel %vm1463, %v1492, 0.0
      %v1507 = vadd.f32 %v1505, %v1506
      %v1508 = vrot.slane %v1507, 4
      %v1509 = vadd.f32 %v1507, %v1508
      %v1510 = vrot.slane %v1509, 2
      %v1511 = vadd.f32 %v1509, %v1510
      %v1512 = vrot.slane %v1511, 1
      %v1513 = vadd.f32 %v1511, %v1512
      %vm1514 = vcmask 1040384
      %v1515 = vsel %vm1514, %v1484, %v1513
      %vm1516 = vcmask 254976
      %1517 = vst.msk [vmem:[%s405] sm:$0x3] %vm1516, %v1515
      %s1518 = smul.u32 8, %s24
      %p1519 = scmp.lt.s32.totalorder %s23, 1
      %s1520 = scalar_select %p1519, %s23, 1
      %p1521 = scmp.lt.s32.totalorder %s1518, 7
      %s1522 = scalar_select %p1521, %s1518, 7
      %s1523 = smul.addr %s1520, 8
      %s1524 = sadd.s32 %s1522, %s1523
      %s1525 = smul.addr %s1524, 4
      %s1526 = scalar_lea.vmem %s6, %s1525
      %s1527 = sadd.s32 %s23, %s24
      %p1528 = scmp.lt.s32.totalorder %s1527, 1
      %s1529 = scalar_select %p1528, %s1527, 1
      %s1530 = smul.addr %s1529, 2
      %s1531 = scalar_lea.vmem %s7, %s1530
      // Predicated region
      $region45: #{pointnet_feature_propagation.3} parent=43 // pred_check
        %p1532 = pneg %p201
      $region46: #{pointnet_feature_propagation.3} parent=43 // pred_check_branch
        %1534 = sbr.rel (%p1532) target = $region48
      $region47: #{pointnet_feature_propagation.3} parent=43 // pred_region
        %s1535 = smul.u32 8, %s24
      $region48: #{pointnet_feature_propagation.3} parent=43 // pred_fallthru
        _
      // Predicated region
      $region49: #{pointnet_feature_propagation.3} parent=43 // pred_check
        %p1536 = pneg %p229
      $region50: #{pointnet_feature_propagation.3} parent=43 // pred_check_branch
        %1538 = sbr.rel (%p1536) target = $region52
      $region51: #{pointnet_feature_propagation.3} parent=43 // pred_region
        %s1539 = sadd.s32 %s23, %s24
      $region52: #{pointnet_feature_propagation.3} parent=43 // pred_fallthru
        _
    $region44: #{pointnet_feature_propagation.3} parent=5 // pred_fallthru
      _
    %p1540 = scmp.le.s32.totalorder 2, %s14
    // Predicated region
    $region53: #{pointnet_feature_propagation.3} parent=5 // pred_check
      %p1541 = pneg %p1540
    $region54: #{pointnet_feature_propagation.3} parent=5 // pred_check_branch
      %1543 = sbr.rel (%p1541) target = $region56
    $region55: #{pointnet_feature_propagation.3} parent=5 // pred_region
      %s1544 = ssub.s32 %s14, 2
      // Predicated region
      $region57: #{pointnet_feature_propagation.3} parent=55 // pred_check
        %p1545 = pneg %p207
      $region58: #{pointnet_feature_propagation.3} parent=55 // pred_check_branch
        %1547 = sbr.rel (%p1545) target = $region60
      $region59: #{pointnet_feature_propagation.3} parent=55 // pred_region
        %s1548 = smul.u32 8, %s26
        %p1549 = scmp.lt.s32.totalorder %s25, 1
        %s1550 = scalar_select %p1549, %s25, 1
        %p1551 = scmp.lt.s32.totalorder %s1548, 7
        %s1552 = scalar_select %p1551, %s1548, 7
        %s1553 = smul.addr %s1550, 8
        %s1554 = sadd.s32 %s1552, %s1553
        %s1555 = smul.addr %s1554, 4
        %s1556 = scalar_lea.vmem %s6, %s1555
      $region60: #{pointnet_feature_propagation.3} parent=55 // pred_fallthru
        _
      // Predicated region
      $region61: #{pointnet_feature_propagation.3} parent=55 // pred_check
        %p1557 = pneg %p235
      $region62: #{pointnet_feature_propagation.3} parent=55 // pred_check_branch
        %1559 = sbr.rel (%p1557) target = $region64
      $region63: #{pointnet_feature_propagation.3} parent=55 // pred_region
        %s1560 = sadd.s32 %s25, %s26
        %p1561 = scmp.lt.s32.totalorder %s1560, 1
        %s1562 = scalar_select %p1561, %s1560, 1
        %s1563 = smul.addr %s1562, 2
        %s1564 = scalar_lea.vmem %s7, %s1563
      $region64: #{pointnet_feature_propagation.3} parent=55 // pred_fallthru
        _
    $region56: #{pointnet_feature_propagation.3} parent=5 // pred_fallthru
      _
  $region6: #{pointnet_feature_propagation.3} parent=0 // loop_footer
    %s18 = sadd.s32 1, %s14
  $region7: #{pointnet_feature_propagation.3} parent=0 // loop_footer_branch
    %13 = sbr.rel target = $region3
  $region8: #{pointnet_feature_propagation.3} parent=0 // loop_exit
    _

</llo_original>
